<compile_context>
chip_gen: v7x
topology: tpu7x:2x2x1
jax: 0.10.0
libtpu: 0.0.40
codegen_flags: <defaults>
</compile_context>

<pallas_src>
import functools

import jax
import jax.numpy as jnp
from jax.experimental import pallas as pl
from jax.experimental.pallas import tpu as pltpu

SELU_ALPHA = 1.6732632423543772848170429916717
SELU_SCALE = 1.0507009873554804934193349852946
BN_EPS = 1e-5


def _selu(x):
    return SELU_SCALE * jnp.where(x > 0, x, SELU_ALPHA * (jnp.exp(x) - 1.0))


# ----------------------- fused Pallas kernel -----------------------

def _im2col_write(dst_ref, src, C, L):
    """Write 7 shifted copies of src (C, L) plus a ones bias row into dst_ref."""
    dst_ref[...] = jnp.zeros(dst_ref.shape, jnp.float32)
    for t in range(7):
        d = t - 3                                   # tap offset relative to center
        if d < 0:
            dst_ref[t * C:(t + 1) * C, (-d):L] = src[:, 0:L + d]
        elif d == 0:
            dst_ref[t * C:(t + 1) * C, :] = src
        else:
            dst_ref[t * C:(t + 1) * C, 0:L - d] = src[:, d:L]
    dst_ref[7 * C:7 * C + 1, :] = jnp.ones((1, L), jnp.float32)


def _fused_kernel(x_ref, w1_ref, wrb1_ref, wrb2_ref, fw1_ref, fb1_ref,
                  fw2_ref, fb2_ref, o_ref, xcol1_ref, xcol2_ref, flat_ref,
                  *, L, C1, C2):
    # x_ref:    (1, 1, Lp)       signal in columns [1, 1+L), rest zeros
    # w1_ref:   (C1, 4)          conv1 taps (3) + folded-BN bias column
    # wrb1_ref: (3*C1, 7*C1+1)   rb1 branches (k=3/5/7 padded to 7 taps) + bias col
    # wrb2_ref: (4*C2, 7*C1+1)   rb2 branches + downsample(k=1) + bias col
    # fw1_ref:  (C2*L/2, H) fb1: (1, H)   fc1 (transposed)
    # fw2_ref:  (H, NC)     fb2: (1, NC)  fc2 (transposed)
    # o_ref:    (1, 1, NC)
    # scratches: xcol1 (7*C1+1, L), xcol2 (7*C1+1, L//2), flat (1, C2*L//2)
    L2 = L // 2
    x0 = x_ref[0]                                    # (1, Lp)
    w1 = w1_ref[...]                                 # (C1, 4)

    # conv1 (C_in=1, k=3, 'same') + folded BN1 + SELU.  K is tiny -> VPU
    # broadcast multiply-adds instead of a tiny-K MXU matmul.
    h = x0[:, 0:L] * w1[:, 0:1]
    h = h + x0[:, 1:1 + L] * w1[:, 1:2]
    h = h + x0[:, 2:2 + L] * w1[:, 2:3]
    h = _selu(h + w1[:, 3:4])                        # (C1, L)

    # Residual block 1: all three branch convs as ONE MXU matmul (biases folded).
    _im2col_write(xcol1_ref, h, C1, L)
    pre1 = jnp.dot(wrb1_ref[...], xcol1_ref[...],
                   preferred_element_type=jnp.float32)          # (3*C1, L)
    r1 = _selu(_selu(pre1[0:C1, :])                  # SELU(bn1(conv1(x)))
               + _selu(pre1[C1:2 * C1, :])           # SELU(bn2(conv2(x)))
               + pre1[2 * C1:3 * C1, :]              # conv3(x)
               + h)                                  # + identity

    # MaxPool1d(2): even/odd column selection via MXU matmuls + elementwise max.
    ri = jax.lax.broadcasted_iota(jnp.int32, (L, L2), 0)
    ci = jax.lax.broadcasted_iota(jnp.int32, (L, L2), 1)
    s_even = (ri == 2 * ci).astype(jnp.float32)
    s_odd = (ri == 2 * ci + 1).astype(jnp.float32)
    p = jnp.maximum(
        jnp.dot(r1, s_even, preferred_element_type=jnp.float32),
        jnp.dot(r1, s_odd, preferred_element_type=jnp.float32))  # (C1, L2)

    # Residual block 2 (+ Conv1d(10,20,1) downsample): again ONE matmul.
    _im2col_write(xcol2_ref, p, C1, L2)
    pre2 = jnp.dot(wrb2_ref[...], xcol2_ref[...],
                   preferred_element_type=jnp.float32)          # (4*C2, L2)
    r2 = _selu(_selu(pre2[0:C2, :])
               + _selu(pre2[C2:2 * C2, :])
               + pre2[2 * C2:3 * C2, :]
               + pre2[3 * C2:4 * C2, :])             # downsample identity

    # torch .view(B, -1) channel-major flatten, staying in VMEM.
    for c in range(C2):
        flat_ref[0:1, c * L2:(c + 1) * L2] = r2[c:c + 1, :]

    # fc1 -> fc2 (reference forward applies no activation between them).
    h1 = jnp.dot(flat_ref[...], fw1_ref[...],
                 preferred_element_type=jnp.float32) + fb1_ref[...]
    out = jnp.dot(h1, fw2_ref[...],
                  preferred_element_type=jnp.float32) + fb2_ref[...]
    o_ref[0] = out.astype(o_ref.dtype)


# ----------------------- parameter setup (glue) -----------------------

def _fold_bn(w, b, gamma, beta, mean, var):
    """Fold eval-mode BatchNorm1d into conv weights/bias."""
    scale = gamma / jnp.sqrt(var + BN_EPS)
    return w * scale[:, None, None], scale * (b - mean) + beta


def _flat_taps(w, b, k_total):
    """(C_out, C_in, k) conv -> (C_out, k_total*C_in + 1) matmul rows.

    Taps are centered in a k_total window ('same' padding equivalence for odd
    k); column order is t*C_in + ci; bias appended as the last column (matched
    by a ones row in the in-kernel im2col buffer).
    """
    c_out, c_in, k = w.shape
    pad_l = (k_total - k) // 2
    wf = jnp.pad(w, ((0, 0), (0, 0), (pad_l, k_total - k - pad_l)))
    wf = jnp.transpose(wf, (0, 2, 1)).reshape(c_out, k_total * c_in)
    return jnp.concatenate([wf, b[:, None]], axis=1)


def init_params(key, input_size, num_classes):
    ks = iter(jax.random.split(key, 64))

    def conv(c_out, c_in, k):
        w = jax.random.normal(next(ks), (c_out, c_in, k), jnp.float32) / jnp.sqrt(
            jnp.float32(c_in * k))
        b = 0.05 * jax.random.normal(next(ks), (c_out,), jnp.float32)
        return w, b

    def bn(c):
        gamma = 1.0 + 0.1 * jax.random.normal(next(ks), (c,), jnp.float32)
        beta = 0.1 * jax.random.normal(next(ks), (c,), jnp.float32)
        mean = 0.1 * jax.random.normal(next(ks), (c,), jnp.float32)
        var = 1.0 + 0.1 * jax.random.uniform(next(ks), (c,), jnp.float32)
        return gamma, beta, mean, var

    params = {}
    # conv1 (1->10, k=3) with BN1 folded; taps + bias column, 3-tap window.
    params["w1_aug"] = _flat_taps(*_fold_bn(*conv(10, 1, 3), *bn(10)), k_total=3)

    # residual block 1 (10->10): branches k=3(+BN), k=5(+BN), k=7 (no BN).
    params["wrb1_aug"] = jnp.concatenate([
        _flat_taps(*_fold_bn(*conv(10, 10, 3), *bn(10)), k_total=7),
        _flat_taps(*_fold_bn(*conv(10, 10, 5), *bn(10)), k_total=7),
        _flat_taps(*conv(10, 10, 7), k_total=7),
    ], axis=0)                                            # (30, 71)

    # residual block 2 (10->20) + downsample Conv1d(10,20,1).
    params["wrb2_aug"] = jnp.concatenate([
        _flat_taps(*_fold_bn(*conv(20, 10, 3), *bn(20)), k_total=7),
        _flat_taps(*_fold_bn(*conv(20, 10, 5), *bn(20)), k_total=7),
        _flat_taps(*conv(20, 10, 7), k_total=7),
        _flat_taps(*conv(20, 10, 1), k_total=7),
    ], axis=0)                                            # (80, 71)

    flat = (input_size // 2) * 20
    w1 = jax.random.normal(next(ks), (128, flat), jnp.float32) / jnp.sqrt(jnp.float32(flat))
    b1 = 0.05 * jax.random.normal(next(ks), (128,), jnp.float32)
    w2 = jax.random.normal(next(ks), (num_classes, 128), jnp.float32) / jnp.sqrt(128.0)
    b2 = 0.05 * jax.random.normal(next(ks), (num_classes,), jnp.float32)
    params["w1t"] = w1.T                                  # (flat, 128)
    params["b1"] = b1.reshape(1, 128)
    params["w2t"] = w2.T                                  # (128, num_classes)
    params["b2"] = b2.reshape(1, num_classes)
    return params


# ----------------------- model forward -----------------------

def fault_diagnosis_forward(x, params):
    # Dropout layers (p=0.5 / p=0.3) run in eval mode -> identity (no-op).
    B, _, L = x.shape
    C1 = params["w1_aug"].shape[0]                  # 10
    C2 = params["wrb2_aug"].shape[0] // 4           # 20
    H = params["b1"].shape[1]                       # 128
    NC = params["b2"].shape[1]
    L2 = L // 2
    Lp = ((L + 2 + 127) // 128) * 128               # lane-aligned padded length

    # conv1 'same' padding (1 each side); pad right up to a 128 multiple.
    x_pad = jnp.pad(x, ((0, 0), (0, 0), (1, Lp - L - 1)))

    fused = pl.pallas_call(
        functools.partial(_fused_kernel, L=L, C1=C1, C2=C2),
        out_shape=jax.ShapeDtypeStruct((B, 1, NC), jnp.float32),
        grid=(B,),
        in_specs=[
            pl.BlockSpec((1, 1, Lp), lambda i: (i, 0, 0)),
            pl.BlockSpec((C1, 4), lambda i: (0, 0)),
            pl.BlockSpec((3 * C1, 7 * C1 + 1), lambda i: (0, 0)),
            pl.BlockSpec((4 * C2, 7 * C1 + 1), lambda i: (0, 0)),
            pl.BlockSpec((C2 * L2, H), lambda i: (0, 0)),
            pl.BlockSpec((1, H), lambda i: (0, 0)),
            pl.BlockSpec((H, NC), lambda i: (0, 0)),
            pl.BlockSpec((1, NC), lambda i: (0, 0)),
        ],
        out_specs=pl.BlockSpec((1, 1, NC), lambda i: (i, 0, 0)),
        scratch_shapes=[
            pltpu.VMEM((7 * C1 + 1, L), jnp.float32),    # rb1 im2col
            pltpu.VMEM((7 * C1 + 1, L2), jnp.float32),   # rb2 im2col
            pltpu.VMEM((1, C2 * L2), jnp.float32),       # flatten buffer
        ],
        compiler_params=pltpu.CompilerParams(dimension_semantics=("parallel",)),
    )
    out = fused(x_pad, params["w1_aug"], params["wrb1_aug"], params["wrb2_aug"],
                params["w1t"], params["b1"], params["w2t"], params["b2"])
    return out.reshape(B, NC)


# ----------------------- pure-JAX reference (for sanity check) -----------------------

def _reference_forward(x, params):
    B, _, L = x.shape
    C1 = params["w1_aug"].shape[0]
    C2 = params["wrb2_aug"].shape[0] // 4
    L2 = L // 2
    hp = jnp.pad(x[:, 0, :], ((0, 0), (1, 1)))      # (B, L+2)
    w1 = params["w1_aug"]
    h = (hp[:, None, 0:L] * w1[None, :, 0:1]
         + hp[:, None, 1:1 + L] * w1[None, :, 1:2]
         + hp[:, None, 2:2 + L] * w1[None, :, 2:3] + w1[None, :, 3:4])
    h = _selu(h)                                     # (B, C1, L)

    def branch_matmul(a, w_aug):
        bb, _, l_ = a.shape
        cols = []
        for t in range(7):
            d = t - 3
            if d < 0:
                blk = jnp.pad(a[:, :, 0:l_ + d], ((0, 0), (0, 0), (-d, 0)))
            elif d == 0:
                blk = a
            else:
                blk = jnp.pad(a[:, :, d:l_], ((0, 0), (0, 0), (0, d)))
            cols.append(blk)
        cols.append(jnp.ones((bb, 1, l_), a.dtype))
        xcol = jnp.concatenate(cols, axis=1)          # (B, 7*C_in+1, L_)
        return jnp.einsum('oc,bcl->bol', w_aug, xcol,
                          precision=jax.lax.Precision.HIGHEST)

    pre1 = branch_matmul(h, params["wrb1_aug"])
    r1 = _selu(_selu(pre1[:, 0:C1]) + _selu(pre1[:, C1:2 * C1])
               + pre1[:, 2 * C1:3 * C1] + h)
    p = jnp.maximum(r1[:, :, 0::2], r1[:, :, 1::2])   # (B, C1, L2)
    pre2 = branch_matmul(p, params["wrb2_aug"])
    r2 = _selu(_selu(pre2[:, 0:C2]) + _selu(pre2[:, C2:2 * C2])
               + pre2[:, 2 * C2:3 * C2] + pre2[:, 3 * C2:4 * C2])
    flat = r2.reshape(B, C2 * L2)
    h1 = jnp.dot(flat, params["w1t"],
                 precision=jax.lax.Precision.HIGHEST) + params["b1"]
    return jnp.dot(h1, params["w2t"],
                   precision=jax.lax.Precision.HIGHEST) + params["b2"]


if __name__ == "__main__":
    INPUT_SIZE = 128          # model's input_size (length of the 1-channel signal)
    NUM_CLASSES = 4
    BATCH = 2

    key = jax.random.PRNGKey(0)
    pkey, xkey = jax.random.split(key)
    params = init_params(pkey, INPUT_SIZE, NUM_CLASSES)
    x = jax.random.normal(xkey, (BATCH, 1, INPUT_SIZE), jnp.float32)

    fwd = jax.jit(fault_diagnosis_forward)
    out = jax.block_until_ready(fwd(x, params))
    assert out.shape == (BATCH, NUM_CLASSES), out.shape
    assert bool(jnp.all(jnp.isfinite(out)))

    ref = _reference_forward(x, params)
    assert jnp.allclose(out, ref, rtol=5e-3, atol=5e-3)
    print("KERNEL_OK")
</pallas_src>

<mosaic_0001>
module attributes {stable_mosaic.version = 11 : i64} {
  func.func @_fused_kernel(%arg0: i32, %arg1: memref<1x1x256xf32, #tpu.memory_space<vmem>>, %arg2: memref<10x4xf32, #tpu.memory_space<vmem>>, %arg3: memref<30x71xf32, #tpu.memory_space<vmem>>, %arg4: memref<80x71xf32, #tpu.memory_space<vmem>>, %arg5: memref<1280x128xf32, #tpu.memory_space<vmem>>, %arg6: memref<1x128xf32, #tpu.memory_space<vmem>>, %arg7: memref<128x4xf32, #tpu.memory_space<vmem>>, %arg8: memref<1x4xf32, #tpu.memory_space<vmem>>, %arg9: memref<1x1x4xf32, #tpu.memory_space<vmem>>, %arg10: memref<71x128xf32, #tpu.memory_space<vmem>>, %arg11: memref<71x64xf32, #tpu.memory_space<vmem>>, %arg12: memref<1x1280xf32, #tpu.memory_space<vmem>>) attributes {dimension_semantics = [#tpu.dimension_semantics<parallel>], iteration_bounds = array<i64: 2>, scalar_prefetch = 0 : i64, scratch_operands = 3 : i64, tpu.core_type = #tpu.core_type<tc>, window_params = [{transform_indices = @transform_0, window_bounds = array<i64: 1, 1, 256>}, {pipeline_mode = #tpu.pipeline_mode<synchronous>, transform_indices = @transform_1, window_bounds = array<i64: 10, 4>}, {pipeline_mode = #tpu.pipeline_mode<synchronous>, transform_indices = @transform_2, window_bounds = array<i64: 30, 71>}, {pipeline_mode = #tpu.pipeline_mode<synchronous>, transform_indices = @transform_3, window_bounds = array<i64: 80, 71>}, {pipeline_mode = #tpu.pipeline_mode<synchronous>, transform_indices = @transform_4, window_bounds = array<i64: 1280, 128>}, {pipeline_mode = #tpu.pipeline_mode<synchronous>, transform_indices = @transform_5, window_bounds = array<i64: 1, 128>}, {pipeline_mode = #tpu.pipeline_mode<synchronous>, transform_indices = @transform_6, window_bounds = array<i64: 128, 4>}, {pipeline_mode = #tpu.pipeline_mode<synchronous>, transform_indices = @transform_7, window_bounds = array<i64: 1, 4>}, {transform_indices = @transform_8, window_bounds = array<i64: 1, 1, 4>}]} {
    %c0 = arith.constant 0 : index
    %c0_0 = arith.constant 0 : index
    %c0_1 = arith.constant 0 : index
    %0 = vector.load %arg1[%c0, %c0_0, %c0_1] : memref<1x1x256xf32, #tpu.memory_space<vmem>>, vector<1x1x256xf32>
    %1 = vector.shape_cast %0 : vector<1x1x256xf32> to vector<1x256xf32>
    %c0_2 = arith.constant 0 : index
    %c0_3 = arith.constant 0 : index
    %2 = vector.load %arg2[%c0_2, %c0_3] : memref<10x4xf32, #tpu.memory_space<vmem>>, vector<10x4xf32>
    %3 = vector.extract_strided_slice %1 {offsets = [0, 0], sizes = [1, 128], strides = [1, 1]} : vector<1x256xf32> to vector<1x128xf32>
    %4 = vector.extract_strided_slice %2 {offsets = [0, 0], sizes = [10, 1], strides = [1, 1]} : vector<10x4xf32> to vector<10x1xf32>
    %5 = vector.broadcast %3 : vector<1x128xf32> to vector<10x128xf32>
    %6 = vector.broadcast %4 : vector<10x1xf32> to vector<10x128xf32>
    %7 = arith.mulf %5, %6 : vector<10x128xf32>
    %8 = vector.extract_strided_slice %1 {offsets = [0, 1], sizes = [1, 128], strides = [1, 1]} : vector<1x256xf32> to vector<1x128xf32>
    %9 = vector.extract_strided_slice %2 {offsets = [0, 1], sizes = [10, 1], strides = [1, 1]} : vector<10x4xf32> to vector<10x1xf32>
    %10 = vector.broadcast %8 : vector<1x128xf32> to vector<10x128xf32>
    %11 = vector.broadcast %9 : vector<10x1xf32> to vector<10x128xf32>
    %12 = arith.mulf %10, %11 : vector<10x128xf32>
    %13 = arith.addf %7, %12 : vector<10x128xf32>
    %14 = vector.extract_strided_slice %1 {offsets = [0, 2], sizes = [1, 128], strides = [1, 1]} : vector<1x256xf32> to vector<1x128xf32>
    %15 = vector.extract_strided_slice %2 {offsets = [0, 2], sizes = [10, 1], strides = [1, 1]} : vector<10x4xf32> to vector<10x1xf32>
    %16 = vector.broadcast %14 : vector<1x128xf32> to vector<10x128xf32>
    %17 = vector.broadcast %15 : vector<10x1xf32> to vector<10x128xf32>
    %18 = arith.mulf %16, %17 : vector<10x128xf32>
    %19 = arith.addf %13, %18 : vector<10x128xf32>
    %20 = vector.extract_strided_slice %2 {offsets = [0, 3], sizes = [10, 1], strides = [1, 1]} : vector<10x4xf32> to vector<10x1xf32>
    %21 = vector.broadcast %20 : vector<10x1xf32> to vector<10x128xf32>
    %22 = arith.addf %19, %21 : vector<10x128xf32>
    %cst = arith.constant 0.000000e+00 : f32
    %23 = vector.broadcast %cst : f32 to vector<10x128xf32>
    %24 = arith.cmpf ogt, %22, %23 : vector<10x128xf32>
    %25 = math.exp %22 : vector<10x128xf32>
    %cst_4 = arith.constant 1.000000e+00 : f32
    %26 = vector.broadcast %cst_4 : f32 to vector<10x128xf32>
    %27 = arith.subf %25, %26 : vector<10x128xf32>
    %cst_5 = arith.constant 1.67326319 : f32
    %28 = vector.broadcast %cst_5 : f32 to vector<10x128xf32>
    %29 = arith.mulf %28, %27 : vector<10x128xf32>
    %30 = arith.select %24, %22, %29 : vector<10x128xi1>, vector<10x128xf32>
    %cst_6 = arith.constant 1.05070102 : f32
    %31 = vector.broadcast %cst_6 : f32 to vector<10x128xf32>
    %32 = arith.mulf %31, %30 : vector<10x128xf32>
    %cst_7 = arith.constant 0.000000e+00 : f32
    %33 = vector.broadcast %cst_7 : f32 to vector<71x128xf32>
    %c0_8 = arith.constant 0 : index
    %c0_9 = arith.constant 0 : index
    %34 = vector.load %arg10[%c0_8, %c0_9] : memref<71x128xf32, #tpu.memory_space<vmem>>, vector<71x128xf32>
    tpu.vector_store %arg10[%c0_8, %c0_9], %33 {strides = array<i32>} : memref<71x128xf32, #tpu.memory_space<vmem>>, vector<71x128xf32>,
    %35 = vector.extract_strided_slice %32 {offsets = [0, 0], sizes = [10, 125], strides = [1, 1]} : vector<10x128xf32> to vector<10x125xf32>
    %c0_10 = arith.constant 0 : index
    %c3 = arith.constant 3 : index
    %36 = vector.load %arg10[%c0_10, %c3] : memref<71x128xf32, #tpu.memory_space<vmem>>, vector<10x125xf32>
    tpu.vector_store %arg10[%c0_10, %c3], %35 {strides = array<i32>} : memref<71x128xf32, #tpu.memory_space<vmem>>, vector<10x125xf32>,
    %37 = vector.extract_strided_slice %32 {offsets = [0, 0], sizes = [10, 126], strides = [1, 1]} : vector<10x128xf32> to vector<10x126xf32>
    %c10 = arith.constant 10 : index
    %c2 = arith.constant 2 : index
    %38 = vector.load %arg10[%c10, %c2] : memref<71x128xf32, #tpu.memory_space<vmem>>, vector<10x126xf32>
    tpu.vector_store %arg10[%c10, %c2], %37 {strides = array<i32>} : memref<71x128xf32, #tpu.memory_space<vmem>>, vector<10x126xf32>,
    %39 = vector.extract_strided_slice %32 {offsets = [0, 0], sizes = [10, 127], strides = [1, 1]} : vector<10x128xf32> to vector<10x127xf32>
    %c20 = arith.constant 20 : index
    %c1 = arith.constant 1 : index
    %40 = vector.load %arg10[%c20, %c1] : memref<71x128xf32, #tpu.memory_space<vmem>>, vector<10x127xf32>
    tpu.vector_store %arg10[%c20, %c1], %39 {strides = array<i32>} : memref<71x128xf32, #tpu.memory_space<vmem>>, vector<10x127xf32>,
    %c30 = arith.constant 30 : index
    %c0_11 = arith.constant 0 : index
    %41 = vector.load %arg10[%c30, %c0_11] : memref<71x128xf32, #tpu.memory_space<vmem>>, vector<10x128xf32>
    tpu.vector_store %arg10[%c30, %c0_11], %32 {strides = array<i32>} : memref<71x128xf32, #tpu.memory_space<vmem>>, vector<10x128xf32>,
    %42 = vector.extract_strided_slice %32 {offsets = [0, 1], sizes = [10, 127], strides = [1, 1]} : vector<10x128xf32> to vector<10x127xf32>
    %c40 = arith.constant 40 : index
    %c0_12 = arith.constant 0 : index
    %43 = vector.load %arg10[%c40, %c0_12] : memref<71x128xf32, #tpu.memory_space<vmem>>, vector<10x127xf32>
    tpu.vector_store %arg10[%c40, %c0_12], %42 {strides = array<i32>} : memref<71x128xf32, #tpu.memory_space<vmem>>, vector<10x127xf32>,
    %44 = vector.extract_strided_slice %32 {offsets = [0, 2], sizes = [10, 126], strides = [1, 1]} : vector<10x128xf32> to vector<10x126xf32>
    %c50 = arith.constant 50 : index
    %c0_13 = arith.constant 0 : index
    %45 = vector.load %arg10[%c50, %c0_13] : memref<71x128xf32, #tpu.memory_space<vmem>>, vector<10x126xf32>
    tpu.vector_store %arg10[%c50, %c0_13], %44 {strides = array<i32>} : memref<71x128xf32, #tpu.memory_space<vmem>>, vector<10x126xf32>,
    %46 = vector.extract_strided_slice %32 {offsets = [0, 3], sizes = [10, 125], strides = [1, 1]} : vector<10x128xf32> to vector<10x125xf32>
    %c60 = arith.constant 60 : index
    %c0_14 = arith.constant 0 : index
    %47 = vector.load %arg10[%c60, %c0_14] : memref<71x128xf32, #tpu.memory_space<vmem>>, vector<10x125xf32>
    tpu.vector_store %arg10[%c60, %c0_14], %46 {strides = array<i32>} : memref<71x128xf32, #tpu.memory_space<vmem>>, vector<10x125xf32>,
    %cst_15 = arith.constant 1.000000e+00 : f32
    %48 = vector.broadcast %cst_15 : f32 to vector<1x128xf32>
    %c70 = arith.constant 70 : index
    %c0_16 = arith.constant 0 : index
    %49 = vector.load %arg10[%c70, %c0_16] : memref<71x128xf32, #tpu.memory_space<vmem>>, vector<1x128xf32>
    tpu.vector_store %arg10[%c70, %c0_16], %48 {strides = array<i32>} : memref<71x128xf32, #tpu.memory_space<vmem>>, vector<1x128xf32>,
    %c0_17 = arith.constant 0 : index
    %c0_18 = arith.constant 0 : index
    %50 = vector.load %arg3[%c0_17, %c0_18] : memref<30x71xf32, #tpu.memory_space<vmem>>, vector<30x71xf32>
    %c0_19 = arith.constant 0 : index
    %c0_20 = arith.constant 0 : index
    %51 = vector.load %arg10[%c0_19, %c0_20] : memref<71x128xf32, #tpu.memory_space<vmem>>, vector<71x128xf32>
    %cst_21 = arith.constant dense<0.000000e+00> : vector<30x128xf32>
    %52 = tpu.matmul %50, %51, %cst_21 {dimension_numbers = #tpu.dot_dimension_numbers<[1], [0], [0], [1], [0, 0, 1, 1], [], []>} : vector<30x71xf32>, vector<71x128xf32>, vector<30x128xf32> -> vector<30x128xf32>
    %53 = vector.extract_strided_slice %52 {offsets = [0, 0], sizes = [10, 128], strides = [1, 1]} : vector<30x128xf32> to vector<10x128xf32>
    %cst_22 = arith.constant 0.000000e+00 : f32
    %54 = vector.broadcast %cst_22 : f32 to vector<10x128xf32>
    %55 = arith.cmpf ogt, %53, %54 : vector<10x128xf32>
    %56 = math.exp %53 : vector<10x128xf32>
    %cst_23 = arith.constant 1.000000e+00 : f32
    %57 = vector.broadcast %cst_23 : f32 to vector<10x128xf32>
    %58 = arith.subf %56, %57 : vector<10x128xf32>
    %cst_24 = arith.constant 1.67326319 : f32
    %59 = vector.broadcast %cst_24 : f32 to vector<10x128xf32>
    %60 = arith.mulf %59, %58 : vector<10x128xf32>
    %61 = arith.select %55, %53, %60 : vector<10x128xi1>, vector<10x128xf32>
    %cst_25 = arith.constant 1.05070102 : f32
    %62 = vector.broadcast %cst_25 : f32 to vector<10x128xf32>
    %63 = arith.mulf %62, %61 : vector<10x128xf32>
    %64 = vector.extract_strided_slice %52 {offsets = [10, 0], sizes = [10, 128], strides = [1, 1]} : vector<30x128xf32> to vector<10x128xf32>
    %cst_26 = arith.constant 0.000000e+00 : f32
    %65 = vector.broadcast %cst_26 : f32 to vector<10x128xf32>
    %66 = arith.cmpf ogt, %64, %65 : vector<10x128xf32>
    %67 = math.exp %64 : vector<10x128xf32>
    %cst_27 = arith.constant 1.000000e+00 : f32
    %68 = vector.broadcast %cst_27 : f32 to vector<10x128xf32>
    %69 = arith.subf %67, %68 : vector<10x128xf32>
    %cst_28 = arith.constant 1.67326319 : f32
    %70 = vector.broadcast %cst_28 : f32 to vector<10x128xf32>
    %71 = arith.mulf %70, %69 : vector<10x128xf32>
    %72 = arith.select %66, %64, %71 : vector<10x128xi1>, vector<10x128xf32>
    %cst_29 = arith.constant 1.05070102 : f32
    %73 = vector.broadcast %cst_29 : f32 to vector<10x128xf32>
    %74 = arith.mulf %73, %72 : vector<10x128xf32>
    %75 = arith.addf %63, %74 : vector<10x128xf32>
    %76 = vector.extract_strided_slice %52 {offsets = [20, 0], sizes = [10, 128], strides = [1, 1]} : vector<30x128xf32> to vector<10x128xf32>
    %77 = arith.addf %75, %76 : vector<10x128xf32>
    %78 = arith.addf %77, %32 : vector<10x128xf32>
    %cst_30 = arith.constant 0.000000e+00 : f32
    %79 = vector.broadcast %cst_30 : f32 to vector<10x128xf32>
    %80 = arith.cmpf ogt, %78, %79 : vector<10x128xf32>
    %81 = math.exp %78 : vector<10x128xf32>
    %cst_31 = arith.constant 1.000000e+00 : f32
    %82 = vector.broadcast %cst_31 : f32 to vector<10x128xf32>
    %83 = arith.subf %81, %82 : vector<10x128xf32>
    %cst_32 = arith.constant 1.67326319 : f32
    %84 = vector.broadcast %cst_32 : f32 to vector<10x128xf32>
    %85 = arith.mulf %84, %83 : vector<10x128xf32>
    %86 = arith.select %80, %78, %85 : vector<10x128xi1>, vector<10x128xf32>
    %cst_33 = arith.constant 1.05070102 : f32
    %87 = vector.broadcast %cst_33 : f32 to vector<10x128xf32>
    %88 = arith.mulf %87, %86 : vector<10x128xf32>
    %89 = tpu.iota {dimensions = array<i32: 0>} : vector<128x64xi32>
    %90 = tpu.iota {dimensions = array<i32: 1>} : vector<128x64xi32>
    %c2_i32 = arith.constant 2 : i32
    %91 = vector.broadcast %c2_i32 : i32 to vector<128x64xi32>
    %92 = arith.muli %91, %90 : vector<128x64xi32>
    %93 = arith.cmpi eq, %89, %92 : vector<128x64xi32>
    %94 = arith.extui %93 : vector<128x64xi1> to vector<128x64xi32>
    %95 = arith.sitofp %94 : vector<128x64xi32> to vector<128x64xf32>
    %c2_i32_34 = arith.constant 2 : i32
    %96 = vector.broadcast %c2_i32_34 : i32 to vector<128x64xi32>
    %97 = arith.muli %96, %90 : vector<128x64xi32>
    %c1_i32 = arith.constant 1 : i32
    %98 = vector.broadcast %c1_i32 : i32 to vector<128x64xi32>
    %99 = arith.addi %97, %98 : vector<128x64xi32>
    %100 = arith.cmpi eq, %89, %99 : vector<128x64xi32>
    %101 = arith.extui %100 : vector<128x64xi1> to vector<128x64xi32>
    %102 = arith.sitofp %101 : vector<128x64xi32> to vector<128x64xf32>
    %cst_35 = arith.constant dense<0.000000e+00> : vector<10x64xf32>
    %103 = tpu.matmul %88, %95, %cst_35 {dimension_numbers = #tpu.dot_dimension_numbers<[1], [0], [0], [1], [0, 0, 1, 1], [], []>} : vector<10x128xf32>, vector<128x64xf32>, vector<10x64xf32> -> vector<10x64xf32>
    %cst_36 = arith.constant dense<0.000000e+00> : vector<10x64xf32>
    %104 = tpu.matmul %88, %102, %cst_36 {dimension_numbers = #tpu.dot_dimension_numbers<[1], [0], [0], [1], [0, 0, 1, 1], [], []>} : vector<10x128xf32>, vector<128x64xf32>, vector<10x64xf32> -> vector<10x64xf32>
    %105 = arith.maximumf %103, %104 : vector<10x64xf32>
    %cst_37 = arith.constant 0.000000e+00 : f32
    %106 = vector.broadcast %cst_37 : f32 to vector<71x64xf32>
    %c0_38 = arith.constant 0 : index
    %c0_39 = arith.constant 0 : index
    %107 = vector.load %arg11[%c0_38, %c0_39] : memref<71x64xf32, #tpu.memory_space<vmem>>, vector<71x64xf32>
    tpu.vector_store %arg11[%c0_38, %c0_39], %106 {strides = array<i32>} : memref<71x64xf32, #tpu.memory_space<vmem>>, vector<71x64xf32>,
    %108 = vector.extract_strided_slice %105 {offsets = [0, 0], sizes = [10, 61], strides = [1, 1]} : vector<10x64xf32> to vector<10x61xf32>
    %c0_40 = arith.constant 0 : index
    %c3_41 = arith.constant 3 : index
    %109 = vector.load %arg11[%c0_40, %c3_41] : memref<71x64xf32, #tpu.memory_space<vmem>>, vector<10x61xf32>
    tpu.vector_store %arg11[%c0_40, %c3_41], %108 {strides = array<i32>} : memref<71x64xf32, #tpu.memory_space<vmem>>, vector<10x61xf32>,
    %110 = vector.extract_strided_slice %105 {offsets = [0, 0], sizes = [10, 62], strides = [1, 1]} : vector<10x64xf32> to vector<10x62xf32>
    %c10_42 = arith.constant 10 : index
    %c2_43 = arith.constant 2 : index
    %111 = vector.load %arg11[%c10_42, %c2_43] : memref<71x64xf32, #tpu.memory_space<vmem>>, vector<10x62xf32>
    tpu.vector_store %arg11[%c10_42, %c2_43], %110 {strides = array<i32>} : memref<71x64xf32, #tpu.memory_space<vmem>>, vector<10x62xf32>,
    %112 = vector.extract_strided_slice %105 {offsets = [0, 0], sizes = [10, 63], strides = [1, 1]} : vector<10x64xf32> to vector<10x63xf32>
    %c20_44 = arith.constant 20 : index
    %c1_45 = arith.constant 1 : index
    %113 = vector.load %arg11[%c20_44, %c1_45] : memref<71x64xf32, #tpu.memory_space<vmem>>, vector<10x63xf32>
    tpu.vector_store %arg11[%c20_44, %c1_45], %112 {strides = array<i32>} : memref<71x64xf32, #tpu.memory_space<vmem>>, vector<10x63xf32>,
    %c30_46 = arith.constant 30 : index
    %c0_47 = arith.constant 0 : index
    %114 = vector.load %arg11[%c30_46, %c0_47] : memref<71x64xf32, #tpu.memory_space<vmem>>, vector<10x64xf32>
    tpu.vector_store %arg11[%c30_46, %c0_47], %105 {strides = array<i32>} : memref<71x64xf32, #tpu.memory_space<vmem>>, vector<10x64xf32>,
    %115 = vector.extract_strided_slice %105 {offsets = [0, 1], sizes = [10, 63], strides = [1, 1]} : vector<10x64xf32> to vector<10x63xf32>
    %c40_48 = arith.constant 40 : index
    %c0_49 = arith.constant 0 : index
    %116 = vector.load %arg11[%c40_48, %c0_49] : memref<71x64xf32, #tpu.memory_space<vmem>>, vector<10x63xf32>
    tpu.vector_store %arg11[%c40_48, %c0_49], %115 {strides = array<i32>} : memref<71x64xf32, #tpu.memory_space<vmem>>, vector<10x63xf32>,
    %117 = vector.extract_strided_slice %105 {offsets = [0, 2], sizes = [10, 62], strides = [1, 1]} : vector<10x64xf32> to vector<10x62xf32>
    %c50_50 = arith.constant 50 : index
    %c0_51 = arith.constant 0 : index
    %118 = vector.load %arg11[%c50_50, %c0_51] : memref<71x64xf32, #tpu.memory_space<vmem>>, vector<10x62xf32>
    tpu.vector_store %arg11[%c50_50, %c0_51], %117 {strides = array<i32>} : memref<71x64xf32, #tpu.memory_space<vmem>>, vector<10x62xf32>,
    %119 = vector.extract_strided_slice %105 {offsets = [0, 3], sizes = [10, 61], strides = [1, 1]} : vector<10x64xf32> to vector<10x61xf32>
    %c60_52 = arith.constant 60 : index
    %c0_53 = arith.constant 0 : index
    %120 = vector.load %arg11[%c60_52, %c0_53] : memref<71x64xf32, #tpu.memory_space<vmem>>, vector<10x61xf32>
    tpu.vector_store %arg11[%c60_52, %c0_53], %119 {strides = array<i32>} : memref<71x64xf32, #tpu.memory_space<vmem>>, vector<10x61xf32>,
    %cst_54 = arith.constant 1.000000e+00 : f32
    %121 = vector.broadcast %cst_54 : f32 to vector<1x64xf32>
    %c70_55 = arith.constant 70 : index
    %c0_56 = arith.constant 0 : index
    %122 = vector.load %arg11[%c70_55, %c0_56] : memref<71x64xf32, #tpu.memory_space<vmem>>, vector<1x64xf32>
    tpu.vector_store %arg11[%c70_55, %c0_56], %121 {strides = array<i32>} : memref<71x64xf32, #tpu.memory_space<vmem>>, vector<1x64xf32>,
    %c0_57 = arith.constant 0 : index
    %c0_58 = arith.constant 0 : index
    %123 = vector.load %arg4[%c0_57, %c0_58] : memref<80x71xf32, #tpu.memory_space<vmem>>, vector<80x71xf32>
    %c0_59 = arith.constant 0 : index
    %c0_60 = arith.constant 0 : index
    %124 = vector.load %arg11[%c0_59, %c0_60] : memref<71x64xf32, #tpu.memory_space<vmem>>, vector<71x64xf32>
    %cst_61 = arith.constant dense<0.000000e+00> : vector<80x64xf32>
    %125 = tpu.matmul %123, %124, %cst_61 {dimension_numbers = #tpu.dot_dimension_numbers<[1], [0], [0], [1], [0, 0, 1, 1], [], []>} : vector<80x71xf32>, vector<71x64xf32>, vector<80x64xf32> -> vector<80x64xf32>
    %126 = vector.extract_strided_slice %125 {offsets = [0, 0], sizes = [20, 64], strides = [1, 1]} : vector<80x64xf32> to vector<20x64xf32>
    %cst_62 = arith.constant 0.000000e+00 : f32
    %127 = vector.broadcast %cst_62 : f32 to vector<20x64xf32>
    %128 = arith.cmpf ogt, %126, %127 : vector<20x64xf32>
    %129 = math.exp %126 : vector<20x64xf32>
    %cst_63 = arith.constant 1.000000e+00 : f32
    %130 = vector.broadcast %cst_63 : f32 to vector<20x64xf32>
    %131 = arith.subf %129, %130 : vector<20x64xf32>
    %cst_64 = arith.constant 1.67326319 : f32
    %132 = vector.broadcast %cst_64 : f32 to vector<20x64xf32>
    %133 = arith.mulf %132, %131 : vector<20x64xf32>
    %134 = arith.select %128, %126, %133 : vector<20x64xi1>, vector<20x64xf32>
    %cst_65 = arith.constant 1.05070102 : f32
    %135 = vector.broadcast %cst_65 : f32 to vector<20x64xf32>
    %136 = arith.mulf %135, %134 : vector<20x64xf32>
    %137 = vector.extract_strided_slice %125 {offsets = [20, 0], sizes = [20, 64], strides = [1, 1]} : vector<80x64xf32> to vector<20x64xf32>
    %cst_66 = arith.constant 0.000000e+00 : f32
    %138 = vector.broadcast %cst_66 : f32 to vector<20x64xf32>
    %139 = arith.cmpf ogt, %137, %138 : vector<20x64xf32>
    %140 = math.exp %137 : vector<20x64xf32>
    %cst_67 = arith.constant 1.000000e+00 : f32
    %141 = vector.broadcast %cst_67 : f32 to vector<20x64xf32>
    %142 = arith.subf %140, %141 : vector<20x64xf32>
    %cst_68 = arith.constant 1.67326319 : f32
    %143 = vector.broadcast %cst_68 : f32 to vector<20x64xf32>
    %144 = arith.mulf %143, %142 : vector<20x64xf32>
    %145 = arith.select %139, %137, %144 : vector<20x64xi1>, vector<20x64xf32>
    %cst_69 = arith.constant 1.05070102 : f32
    %146 = vector.broadcast %cst_69 : f32 to vector<20x64xf32>
    %147 = arith.mulf %146, %145 : vector<20x64xf32>
    %148 = arith.addf %136, %147 : vector<20x64xf32>
    %149 = vector.extract_strided_slice %125 {offsets = [40, 0], sizes = [20, 64], strides = [1, 1]} : vector<80x64xf32> to vector<20x64xf32>
    %150 = arith.addf %148, %149 : vector<20x64xf32>
    %151 = vector.extract_strided_slice %125 {offsets = [60, 0], sizes = [20, 64], strides = [1, 1]} : vector<80x64xf32> to vector<20x64xf32>
    %152 = arith.addf %150, %151 : vector<20x64xf32>
    %cst_70 = arith.constant 0.000000e+00 : f32
    %153 = vector.broadcast %cst_70 : f32 to vector<20x64xf32>
    %154 = arith.cmpf ogt, %152, %153 : vector<20x64xf32>
    %155 = math.exp %152 : vector<20x64xf32>
    %cst_71 = arith.constant 1.000000e+00 : f32
    %156 = vector.broadcast %cst_71 : f32 to vector<20x64xf32>
    %157 = arith.subf %155, %156 : vector<20x64xf32>
    %cst_72 = arith.constant 1.67326319 : f32
    %158 = vector.broadcast %cst_72 : f32 to vector<20x64xf32>
    %159 = arith.mulf %158, %157 : vector<20x64xf32>
    %160 = arith.select %154, %152, %159 : vector<20x64xi1>, vector<20x64xf32>
    %cst_73 = arith.constant 1.05070102 : f32
    %161 = vector.broadcast %cst_73 : f32 to vector<20x64xf32>
    %162 = arith.mulf %161, %160 : vector<20x64xf32>
    %163 = vector.extract_strided_slice %162 {offsets = [0, 0], sizes = [1, 64], strides = [1, 1]} : vector<20x64xf32> to vector<1x64xf32>
    %c0_74 = arith.constant 0 : index
    %c0_75 = arith.constant 0 : index
    %164 = vector.load %arg12[%c0_74, %c0_75] : memref<1x1280xf32, #tpu.memory_space<vmem>>, vector<1x64xf32>
    tpu.vector_store %arg12[%c0_74, %c0_75], %163 {strides = array<i32>} : memref<1x1280xf32, #tpu.memory_space<vmem>>, vector<1x64xf32>,
    %165 = vector.extract_strided_slice %162 {offsets = [1, 0], sizes = [1, 64], strides = [1, 1]} : vector<20x64xf32> to vector<1x64xf32>
    %c0_76 = arith.constant 0 : index
    %c64 = arith.constant 64 : index
    %166 = vector.load %arg12[%c0_76, %c64] : memref<1x1280xf32, #tpu.memory_space<vmem>>, vector<1x64xf32>
    tpu.vector_store %arg12[%c0_76, %c64], %165 {strides = array<i32>} : memref<1x1280xf32, #tpu.memory_space<vmem>>, vector<1x64xf32>,
    %167 = vector.extract_strided_slice %162 {offsets = [2, 0], sizes = [1, 64], strides = [1, 1]} : vector<20x64xf32> to vector<1x64xf32>
    %c0_77 = arith.constant 0 : index
    %c128 = arith.constant 128 : index
    %168 = vector.load %arg12[%c0_77, %c128] : memref<1x1280xf32, #tpu.memory_space<vmem>>, vector<1x64xf32>
    tpu.vector_store %arg12[%c0_77, %c128], %167 {strides = array<i32>} : memref<1x1280xf32, #tpu.memory_space<vmem>>, vector<1x64xf32>,
    %169 = vector.extract_strided_slice %162 {offsets = [3, 0], sizes = [1, 64], strides = [1, 1]} : vector<20x64xf32> to vector<1x64xf32>
    %c0_78 = arith.constant 0 : index
    %c192 = arith.constant 192 : index
    %170 = vector.load %arg12[%c0_78, %c192] : memref<1x1280xf32, #tpu.memory_space<vmem>>, vector<1x64xf32>
    tpu.vector_store %arg12[%c0_78, %c192], %169 {strides = array<i32>} : memref<1x1280xf32, #tpu.memory_space<vmem>>, vector<1x64xf32>,
    %171 = vector.extract_strided_slice %162 {offsets = [4, 0], sizes = [1, 64], strides = [1, 1]} : vector<20x64xf32> to vector<1x64xf32>
    %c0_79 = arith.constant 0 : index
    %c256 = arith.constant 256 : index
    %172 = vector.load %arg12[%c0_79, %c256] : memref<1x1280xf32, #tpu.memory_space<vmem>>, vector<1x64xf32>
    tpu.vector_store %arg12[%c0_79, %c256], %171 {strides = array<i32>} : memref<1x1280xf32, #tpu.memory_space<vmem>>, vector<1x64xf32>,
    %173 = vector.extract_strided_slice %162 {offsets = [5, 0], sizes = [1, 64], strides = [1, 1]} : vector<20x64xf32> to vector<1x64xf32>
    %c0_80 = arith.constant 0 : index
    %c320 = arith.constant 320 : index
    %174 = vector.load %arg12[%c0_80, %c320] : memref<1x1280xf32, #tpu.memory_space<vmem>>, vector<1x64xf32>
    tpu.vector_store %arg12[%c0_80, %c320], %173 {strides = array<i32>} : memref<1x1280xf32, #tpu.memory_space<vmem>>, vector<1x64xf32>,
    %175 = vector.extract_strided_slice %162 {offsets = [6, 0], sizes = [1, 64], strides = [1, 1]} : vector<20x64xf32> to vector<1x64xf32>
    %c0_81 = arith.constant 0 : index
    %c384 = arith.constant 384 : index
    %176 = vector.load %arg12[%c0_81, %c384] : memref<1x1280xf32, #tpu.memory_space<vmem>>, vector<1x64xf32>
    tpu.vector_store %arg12[%c0_81, %c384], %175 {strides = array<i32>} : memref<1x1280xf32, #tpu.memory_space<vmem>>, vector<1x64xf32>,
    %177 = vector.extract_strided_slice %162 {offsets = [7, 0], sizes = [1, 64], strides = [1, 1]} : vector<20x64xf32> to vector<1x64xf32>
    %c0_82 = arith.constant 0 : index
    %c448 = arith.constant 448 : index
    %178 = vector.load %arg12[%c0_82, %c448] : memref<1x1280xf32, #tpu.memory_space<vmem>>, vector<1x64xf32>
    tpu.vector_store %arg12[%c0_82, %c448], %177 {strides = array<i32>} : memref<1x1280xf32, #tpu.memory_space<vmem>>, vector<1x64xf32>,
    %179 = vector.extract_strided_slice %162 {offsets = [8, 0], sizes = [1, 64], strides = [1, 1]} : vector<20x64xf32> to vector<1x64xf32>
    %c0_83 = arith.constant 0 : index
    %c512 = arith.constant 512 : index
    %180 = vector.load %arg12[%c0_83, %c512] : memref<1x1280xf32, #tpu.memory_space<vmem>>, vector<1x64xf32>
    tpu.vector_store %arg12[%c0_83, %c512], %179 {strides = array<i32>} : memref<1x1280xf32, #tpu.memory_space<vmem>>, vector<1x64xf32>,
    %181 = vector.extract_strided_slice %162 {offsets = [9, 0], sizes = [1, 64], strides = [1, 1]} : vector<20x64xf32> to vector<1x64xf32>
    %c0_84 = arith.constant 0 : index
    %c576 = arith.constant 576 : index
    %182 = vector.load %arg12[%c0_84, %c576] : memref<1x1280xf32, #tpu.memory_space<vmem>>, vector<1x64xf32>
    tpu.vector_store %arg12[%c0_84, %c576], %181 {strides = array<i32>} : memref<1x1280xf32, #tpu.memory_space<vmem>>, vector<1x64xf32>,
    %183 = vector.extract_strided_slice %162 {offsets = [10, 0], sizes = [1, 64], strides = [1, 1]} : vector<20x64xf32> to vector<1x64xf32>
    %c0_85 = arith.constant 0 : index
    %c640 = arith.constant 640 : index
    %184 = vector.load %arg12[%c0_85, %c640] : memref<1x1280xf32, #tpu.memory_space<vmem>>, vector<1x64xf32>
    tpu.vector_store %arg12[%c0_85, %c640], %183 {strides = array<i32>} : memref<1x1280xf32, #tpu.memory_space<vmem>>, vector<1x64xf32>,
    %185 = vector.extract_strided_slice %162 {offsets = [11, 0], sizes = [1, 64], strides = [1, 1]} : vector<20x64xf32> to vector<1x64xf32>
    %c0_86 = arith.constant 0 : index
    %c704 = arith.constant 704 : index
    %186 = vector.load %arg12[%c0_86, %c704] : memref<1x1280xf32, #tpu.memory_space<vmem>>, vector<1x64xf32>
    tpu.vector_store %arg12[%c0_86, %c704], %185 {strides = array<i32>} : memref<1x1280xf32, #tpu.memory_space<vmem>>, vector<1x64xf32>,
    %187 = vector.extract_strided_slice %162 {offsets = [12, 0], sizes = [1, 64], strides = [1, 1]} : vector<20x64xf32> to vector<1x64xf32>
    %c0_87 = arith.constant 0 : index
    %c768 = arith.constant 768 : index
    %188 = vector.load %arg12[%c0_87, %c768] : memref<1x1280xf32, #tpu.memory_space<vmem>>, vector<1x64xf32>
    tpu.vector_store %arg12[%c0_87, %c768], %187 {strides = array<i32>} : memref<1x1280xf32, #tpu.memory_space<vmem>>, vector<1x64xf32>,
    %189 = vector.extract_strided_slice %162 {offsets = [13, 0], sizes = [1, 64], strides = [1, 1]} : vector<20x64xf32> to vector<1x64xf32>
    %c0_88 = arith.constant 0 : index
    %c832 = arith.constant 832 : index
    %190 = vector.load %arg12[%c0_88, %c832] : memref<1x1280xf32, #tpu.memory_space<vmem>>, vector<1x64xf32>
    tpu.vector_store %arg12[%c0_88, %c832], %189 {strides = array<i32>} : memref<1x1280xf32, #tpu.memory_space<vmem>>, vector<1x64xf32>,
    %191 = vector.extract_strided_slice %162 {offsets = [14, 0], sizes = [1, 64], strides = [1, 1]} : vector<20x64xf32> to vector<1x64xf32>
    %c0_89 = arith.constant 0 : index
    %c896 = arith.constant 896 : index
    %192 = vector.load %arg12[%c0_89, %c896] : memref<1x1280xf32, #tpu.memory_space<vmem>>, vector<1x64xf32>
    tpu.vector_store %arg12[%c0_89, %c896], %191 {strides = array<i32>} : memref<1x1280xf32, #tpu.memory_space<vmem>>, vector<1x64xf32>,
    %193 = vector.extract_strided_slice %162 {offsets = [15, 0], sizes = [1, 64], strides = [1, 1]} : vector<20x64xf32> to vector<1x64xf32>
    %c0_90 = arith.constant 0 : index
    %c960 = arith.constant 960 : index
    %194 = vector.load %arg12[%c0_90, %c960] : memref<1x1280xf32, #tpu.memory_space<vmem>>, vector<1x64xf32>
    tpu.vector_store %arg12[%c0_90, %c960], %193 {strides = array<i32>} : memref<1x1280xf32, #tpu.memory_space<vmem>>, vector<1x64xf32>,
    %195 = vector.extract_strided_slice %162 {offsets = [16, 0], sizes = [1, 64], strides = [1, 1]} : vector<20x64xf32> to vector<1x64xf32>
    %c0_91 = arith.constant 0 : index
    %c1024 = arith.constant 1024 : index
    %196 = vector.load %arg12[%c0_91, %c1024] : memref<1x1280xf32, #tpu.memory_space<vmem>>, vector<1x64xf32>
    tpu.vector_store %arg12[%c0_91, %c1024], %195 {strides = array<i32>} : memref<1x1280xf32, #tpu.memory_space<vmem>>, vector<1x64xf32>,
    %197 = vector.extract_strided_slice %162 {offsets = [17, 0], sizes = [1, 64], strides = [1, 1]} : vector<20x64xf32> to vector<1x64xf32>
    %c0_92 = arith.constant 0 : index
    %c1088 = arith.constant 1088 : index
    %198 = vector.load %arg12[%c0_92, %c1088] : memref<1x1280xf32, #tpu.memory_space<vmem>>, vector<1x64xf32>
    tpu.vector_store %arg12[%c0_92, %c1088], %197 {strides = array<i32>} : memref<1x1280xf32, #tpu.memory_space<vmem>>, vector<1x64xf32>,
    %199 = vector.extract_strided_slice %162 {offsets = [18, 0], sizes = [1, 64], strides = [1, 1]} : vector<20x64xf32> to vector<1x64xf32>
    %c0_93 = arith.constant 0 : index
    %c1152 = arith.constant 1152 : index
    %200 = vector.load %arg12[%c0_93, %c1152] : memref<1x1280xf32, #tpu.memory_space<vmem>>, vector<1x64xf32>
    tpu.vector_store %arg12[%c0_93, %c1152], %199 {strides = array<i32>} : memref<1x1280xf32, #tpu.memory_space<vmem>>, vector<1x64xf32>,
    %201 = vector.extract_strided_slice %162 {offsets = [19, 0], sizes = [1, 64], strides = [1, 1]} : vector<20x64xf32> to vector<1x64xf32>
    %c0_94 = arith.constant 0 : index
    %c1216 = arith.constant 1216 : index
    %202 = vector.load %arg12[%c0_94, %c1216] : memref<1x1280xf32, #tpu.memory_space<vmem>>, vector<1x64xf32>
    tpu.vector_store %arg12[%c0_94, %c1216], %201 {strides = array<i32>} : memref<1x1280xf32, #tpu.memory_space<vmem>>, vector<1x64xf32>,
    %c0_95 = arith.constant 0 : index
    %c0_96 = arith.constant 0 : index
    %203 = vector.load %arg12[%c0_95, %c0_96] : memref<1x1280xf32, #tpu.memory_space<vmem>>, vector<1x1280xf32>
    %c0_97 = arith.constant 0 : index
    %c0_98 = arith.constant 0 : index
    %204 = vector.load %arg5[%c0_97, %c0_98] : memref<1280x128xf32, #tpu.memory_space<vmem>>, vector<1280x128xf32>
    %cst_99 = arith.constant dense<0.000000e+00> : vector<1x128xf32>
    %205 = tpu.matmul %203, %204, %cst_99 {dimension_numbers = #tpu.dot_dimension_numbers<[1], [0], [0], [1], [0, 0, 1, 1], [], []>} : vector<1x1280xf32>, vector<1280x128xf32>, vector<1x128xf32> -> vector<1x128xf32>
    %c0_100 = arith.constant 0 : index
    %c0_101 = arith.constant 0 : index
    %206 = vector.load %arg6[%c0_100, %c0_101] : memref<1x128xf32, #tpu.memory_space<vmem>>, vector<1x128xf32>
    %207 = arith.addf %205, %206 : vector<1x128xf32>
    %c0_102 = arith.constant 0 : index
    %c0_103 = arith.constant 0 : index
    %208 = vector.load %arg7[%c0_102, %c0_103] : memref<128x4xf32, #tpu.memory_space<vmem>>, vector<128x4xf32>
    %cst_104 = arith.constant dense<0.000000e+00> : vector<1x4xf32>
    %209 = tpu.matmul %207, %208, %cst_104 {dimension_numbers = #tpu.dot_dimension_numbers<[1], [0], [0], [1], [0, 0, 1, 1], [], []>} : vector<1x128xf32>, vector<128x4xf32>, vector<1x4xf32> -> vector<1x4xf32>
    %c0_105 = arith.constant 0 : index
    %c0_106 = arith.constant 0 : index
    %210 = vector.load %arg8[%c0_105, %c0_106] : memref<1x4xf32, #tpu.memory_space<vmem>>, vector<1x4xf32>
    %211 = arith.addf %209, %210 : vector<1x4xf32>
    %c0_107 = arith.constant 0 : index
    %c0_108 = arith.constant 0 : index
    %c0_109 = arith.constant 0 : index
    %212 = vector.load %arg9[%c0_107, %c0_108, %c0_109] : memref<1x1x4xf32, #tpu.memory_space<vmem>>, vector<1x1x4xf32>
    %213 = vector.shape_cast %212 : vector<1x1x4xf32> to vector<1x4xf32>
    %214 = vector.shape_cast %211 : vector<1x4xf32> to vector<1x1x4xf32>
    tpu.vector_store %arg9[%c0_107, %c0_108, %c0_109], %214 {strides = array<i32>} : memref<1x1x4xf32, #tpu.memory_space<vmem>>, vector<1x1x4xf32>,
    return
  }
  func.func @transform_0(%arg0: i32) -> (i32, i32, i32) {
    %c0_i32 = arith.constant 0 : i32
    %c0_i32_0 = arith.constant 0 : i32
    %c0_i32_1 = arith.constant 0 : i32
    return %arg0, %c0_i32, %c0_i32_0 : i32, i32, i32
  }
  func.func @transform_1(%arg0: i32) -> (i32, i32) {
    %c0_i32 = arith.constant 0 : i32
    %c0_i32_0 = arith.constant 0 : i32
    %c0_i32_1 = arith.constant 0 : i32
    return %c0_i32, %c0_i32_0 : i32, i32
  }
  func.func @transform_2(%arg0: i32) -> (i32, i32) {
    %c0_i32 = arith.constant 0 : i32
    %c0_i32_0 = arith.constant 0 : i32
    %c0_i32_1 = arith.constant 0 : i32
    return %c0_i32, %c0_i32_0 : i32, i32
  }
  func.func @transform_3(%arg0: i32) -> (i32, i32) {
    %c0_i32 = arith.constant 0 : i32
    %c0_i32_0 = arith.constant 0 : i32
    %c0_i32_1 = arith.constant 0 : i32
    return %c0_i32, %c0_i32_0 : i32, i32
  }
  func.func @transform_4(%arg0: i32) -> (i32, i32) {
    %c0_i32 = arith.constant 0 : i32
    %c0_i32_0 = arith.constant 0 : i32
    %c0_i32_1 = arith.constant 0 : i32
    return %c0_i32, %c0_i32_0 : i32, i32
  }
  func.func @transform_5(%arg0: i32) -> (i32, i32) {
    %c0_i32 = arith.constant 0 : i32
    %c0_i32_0 = arith.constant 0 : i32
    %c0_i32_1 = arith.constant 0 : i32
    return %c0_i32, %c0_i32_0 : i32, i32
  }
  func.func @transform_6(%arg0: i32) -> (i32, i32) {
    %c0_i32 = arith.constant 0 : i32
    %c0_i32_0 = arith.constant 0 : i32
    %c0_i32_1 = arith.constant 0 : i32
    return %c0_i32, %c0_i32_0 : i32, i32
  }
  func.func @transform_7(%arg0: i32) -> (i32, i32) {
    %c0_i32 = arith.constant 0 : i32
    %c0_i32_0 = arith.constant 0 : i32
    %c0_i32_1 = arith.constant 0 : i32
    return %c0_i32, %c0_i32_0 : i32, i32
  }
  func.func @transform_8(%arg0: i32) -> (i32, i32, i32) {
    %c0_i32 = arith.constant 0 : i32
    %c0_i32_0 = arith.constant 0 : i32
    %c0_i32_1 = arith.constant 0 : i32
    return %arg0, %c0_i32, %c0_i32_0 : i32, i32, i32
  }
}

</mosaic_0001>

<llo_original>
// kernel: fault_diagnosis_forward.1
$region0: #{fault_diagnosis_forward.1}
  #allocation0 [shape = 'u32[]', space=smem, size = 0x4, offset = 0x4, fixed_abs, tag = 'smem constant byte address 0x4 - core index']
  #allocation1 [shape = 'u32[144,128]{1,0:T(1,128)}', space=vmem, size = 0x12000, scoped, tag = 'internal scratch']
  #allocation2 [shape = 'f32[71,128]{1,0:T(8,128)}', space=vmem, size = 0x9000, scoped, tag = 'scratch operand']
  #allocation3 [shape = 'f32[71,64]{1,0:T(8,128)}', space=vmem, size = 0x9000, scoped, tag = 'scratch operand']
  #allocation4 [shape = 'f32[1,1280]{1,0:T(1,128)}', space=vmem, size = 0x1400, scoped, tag = 'scratch operand']
  %s0 = inlined_call_operand.vmem [shape: f32[2,1,256], index: 0, kind: input, shape index: {}]
  %s1 = inlined_call_operand.vmem [shape: f32[10,4], index: 1, kind: input, shape index: {}]
  %s2 = inlined_call_operand.vmem [shape: f32[30,71], index: 2, kind: input, shape index: {}]
  %s3 = inlined_call_operand.vmem [shape: f32[80,71], index: 3, kind: input, shape index: {}]
  %s4 = inlined_call_operand.hbm [shape: f32[1280,128], index: 4, kind: input, shape index: {}]
  %s5 = inlined_call_operand.vmem [shape: f32[1,128], index: 5, kind: input, shape index: {}]
  %s6 = inlined_call_operand.vmem [shape: f32[128,4], index: 6, kind: input, shape index: {}]
  %s7 = inlined_call_operand.vmem [shape: f32[1,4], index: 7, kind: input, shape index: {}]
  %s8 = inlined_call_operand.hbm [shape: f32[2,1,4], index: 8, kind: output, shape index: {}]
  %s9 = sld [smem:[#allocation0]]
  $region69: #{fault_diagnosis_forward.1} parent=0
    _
  %s11 = ssub.s32 1, %s9
  %s12 = scalar_select 0, %s11, %s9
  $region1: #{fault_diagnosis_forward.1} parent=0
    #allocation5 [shape = 'u8[655360]{0}', space=vmem, size = 0xa0000, scoped, tag = 'input window, operand 4, single buffered']
    #allocation6 [shape = 's32[2]{0}', space=sflag, size = 0x8, scoped, tag = 'scoped memory for fault_diagnosis_forward.1']
    #allocation7 [shape = 's32[2]{0}', space=sflag, size = 0x8, scoped, tag = 'scoped memory for fault_diagnosis_forward.1']
    #allocation8 [shape = 'u8[1024]{0}', space=vmem, size = 0x400, scoped, tag = 'output window, operand 0']
    %13 = vsyncpa [#allocation6], 0
    %14 = vsyncpa [#allocation7], 0
    %s15 = scalar_lea.sflag [#allocation7], 1
    %16 = vsyncpa %s15, 0
    loop: start=0, step=1, limit=4
    $region2: #{fault_diagnosis_forward.1} parent=1 // loop_pre_header
      _
    $region3: #{fault_diagnosis_forward.1} parent=1 // loop_header
      %s18 = sphi 0, %s22
      %p19 = scmp.ge.s32.totalorder %s18, 4
      %s28 = sphi 0, %s30
      %s31 = sphi 0, %s28
      %s32 = sphi 0, %s31
      %s48 = sphi 0, %s32
      %s52 = sphi 0, %s52
      %s54 = sphi 0, %s52
      %s55 = sphi 0, %s54
      %s69 = sphi 0, %s55
      %s73 = sphi 0, %s73
      %s75 = sphi 0, %s73
      %s76 = sphi 0, %s75
      %s90 = sphi 0, %s76
      %s94 = sphi 0, %s94
      %s96 = sphi 0, %s94
      %s97 = sphi 0, %s96
      %s111 = sphi 0, %s97
      %s115 = sphi 0, %s115
      %s117 = sphi 0, %s115
      %s118 = sphi 0, %s117
      %s132 = sphi 0, %s118
      %s136 = sphi 0, %s136
      %s138 = sphi 0, %s136
      %s139 = sphi 0, %s138
      %s153 = sphi 0, %s139
      %s157 = sphi 0, %s157
      %s159 = sphi 0, %s157
      %s160 = sphi 0, %s159
      %s174 = sphi 0, %s160
      %s178 = sphi 0, %s178
      %s180 = sphi 0, %s178
      %s181 = sphi 0, %s180
      %s195 = sphi 0, %s181
      %s201 = sphi 0, %s203
      %s204 = sphi 0, %s201
      %s205 = sphi 0, %s204
      %s221 = sphi 0, %s205
    $region4: #{fault_diagnosis_forward.1} parent=1 // loop_header_branch
      %21 = sbr.rel (%p19) target = $region8
    $region5: #{fault_diagnosis_forward.1} parent=1 // loop_body
      %s23 = ssub.s32 %s18, 1
      %s24 = ssub.s32 %s18, 2
      %s25 = sadd.s32 %s18, 1
      %s26 = ssub.s32 %s18, %s25
      %p27 = scmp.eq.s32.totalorder %s26, 0
      %s29 = sadd.s32 %s28, 1
      %s30 = scalar_select %p27, %s28, %s29
      %p33 = pneg %p27
      %p34 = scmp.eq.s32.totalorder %s18, 1
      %p35 = por %p33, %p34
      %p36 = scmp.ne.s32.totalorder %s28, %s31
      %p37 = scmp.eq.s32.totalorder %s18, 0
      %p38 = por %p36, %p37
      %p39 = scmp.ne.s32.totalorder %s28, %s31
      %p40 = scmp.eq.s32.totalorder %s23, 1
      %p41 = por %p39, %p40
      %p42 = scmp.ne.s32.totalorder %s31, %s32
      %p43 = scmp.eq.s32.totalorder %s23, 0
      %p44 = por %p42, %p43
      %p45 = scmp.ne.s32.totalorder %s31, %s32
      %p46 = scmp.eq.s32.totalorder %s24, 1
      %p47 = por %p45, %p46
      %p49 = scmp.ne.s32.totalorder %s32, %s48
      %p50 = scmp.eq.s32.totalorder %s24, 0
      %p51 = por %p49, %p50
      %s53 = sadd.s32 %s52, 1
      %p56 = scmp.eq.s32.totalorder %s18, 1
      %p57 = scmp.ne.s32.totalorder %s52, %s54
      %p58 = scmp.eq.s32.totalorder %s18, 0
      %p59 = por %p57, %p58
      %p60 = scmp.ne.s32.totalorder %s52, %s54
      %p61 = scmp.eq.s32.totalorder %s23, 1
      %p62 = por %p60, %p61
      %p63 = scmp.ne.s32.totalorder %s54, %s55
      %p64 = scmp.eq.s32.totalorder %s23, 0
      %p65 = por %p63, %p64
      %p66 = scmp.ne.s32.totalorder %s54, %s55
      %p67 = scmp.eq.s32.totalorder %s24, 1
      %p68 = por %p66, %p67
      %p70 = scmp.ne.s32.totalorder %s55, %s69
      %p71 = scmp.eq.s32.totalorder %s24, 0
      %p72 = por %p70, %p71
      %s74 = sadd.s32 %s73, 1
      %p77 = scmp.eq.s32.totalorder %s18, 1
      %p78 = scmp.ne.s32.totalorder %s73, %s75
      %p79 = scmp.eq.s32.totalorder %s18, 0
      %p80 = por %p78, %p79
      %p81 = scmp.ne.s32.totalorder %s73, %s75
      %p82 = scmp.eq.s32.totalorder %s23, 1
      %p83 = por %p81, %p82
      %p84 = scmp.ne.s32.totalorder %s75, %s76
      %p85 = scmp.eq.s32.totalorder %s23, 0
      %p86 = por %p84, %p85
      %p87 = scmp.ne.s32.totalorder %s75, %s76
      %p88 = scmp.eq.s32.totalorder %s24, 1
      %p89 = por %p87, %p88
      %p91 = scmp.ne.s32.totalorder %s76, %s90
      %p92 = scmp.eq.s32.totalorder %s24, 0
      %p93 = por %p91, %p92
      %s95 = sadd.s32 %s94, 1
      %p98 = scmp.eq.s32.totalorder %s18, 1
      %p99 = scmp.ne.s32.totalorder %s94, %s96
      %p100 = scmp.eq.s32.totalorder %s18, 0
      %p101 = por %p99, %p100
      %p102 = scmp.ne.s32.totalorder %s94, %s96
      %p103 = scmp.eq.s32.totalorder %s23, 1
      %p104 = por %p102, %p103
      %p105 = scmp.ne.s32.totalorder %s96, %s97
      %p106 = scmp.eq.s32.totalorder %s23, 0
      %p107 = por %p105, %p106
      %p108 = scmp.ne.s32.totalorder %s96, %s97
      %p109 = scmp.eq.s32.totalorder %s24, 1
      %p110 = por %p108, %p109
      %p112 = scmp.ne.s32.totalorder %s97, %s111
      %p113 = scmp.eq.s32.totalorder %s24, 0
      %p114 = por %p112, %p113
      %s116 = sadd.s32 %s115, 1
      %p119 = scmp.eq.s32.totalorder %s18, 1
      %p120 = scmp.ne.s32.totalorder %s115, %s117
      %p121 = scmp.eq.s32.totalorder %s18, 0
      %p122 = por %p120, %p121
      %p123 = scmp.ne.s32.totalorder %s115, %s117
      %p124 = scmp.eq.s32.totalorder %s23, 1
      %p125 = por %p123, %p124
      %p126 = scmp.ne.s32.totalorder %s117, %s118
      %p127 = scmp.eq.s32.totalorder %s23, 0
      %p128 = por %p126, %p127
      %p129 = scmp.ne.s32.totalorder %s117, %s118
      %p130 = scmp.eq.s32.totalorder %s24, 1
      %p131 = por %p129, %p130
      %p133 = scmp.ne.s32.totalorder %s118, %s132
      %p134 = scmp.eq.s32.totalorder %s24, 0
      %p135 = por %p133, %p134
      %s137 = sadd.s32 %s136, 1
      %p140 = scmp.eq.s32.totalorder %s18, 1
      %p141 = scmp.ne.s32.totalorder %s136, %s138
      %p142 = scmp.eq.s32.totalorder %s18, 0
      %p143 = por %p141, %p142
      %p144 = scmp.ne.s32.totalorder %s136, %s138
      %p145 = scmp.eq.s32.totalorder %s23, 1
      %p146 = por %p144, %p145
      %p147 = scmp.ne.s32.totalorder %s138, %s139
      %p148 = scmp.eq.s32.totalorder %s23, 0
      %p149 = por %p147, %p148
      %p150 = scmp.ne.s32.totalorder %s138, %s139
      %p151 = scmp.eq.s32.totalorder %s24, 1
      %p152 = por %p150, %p151
      %p154 = scmp.ne.s32.totalorder %s139, %s153
      %p155 = scmp.eq.s32.totalorder %s24, 0
      %p156 = por %p154, %p155
      %s158 = sadd.s32 %s157, 1
      %p161 = scmp.eq.s32.totalorder %s18, 1
      %p162 = scmp.ne.s32.totalorder %s157, %s159
      %p163 = scmp.eq.s32.totalorder %s18, 0
      %p164 = por %p162, %p163
      %p165 = scmp.ne.s32.totalorder %s157, %s159
      %p166 = scmp.eq.s32.totalorder %s23, 1
      %p167 = por %p165, %p166
      %p168 = scmp.ne.s32.totalorder %s159, %s160
      %p169 = scmp.eq.s32.totalorder %s23, 0
      %p170 = por %p168, %p169
      %p171 = scmp.ne.s32.totalorder %s159, %s160
      %p172 = scmp.eq.s32.totalorder %s24, 1
      %p173 = por %p171, %p172
      %p175 = scmp.ne.s32.totalorder %s160, %s174
      %p176 = scmp.eq.s32.totalorder %s24, 0
      %p177 = por %p175, %p176
      %s179 = sadd.s32 %s178, 1
      %p182 = scmp.eq.s32.totalorder %s18, 1
      %p183 = scmp.ne.s32.totalorder %s178, %s180
      %p184 = scmp.eq.s32.totalorder %s18, 0
      %p185 = por %p183, %p184
      %p186 = scmp.ne.s32.totalorder %s178, %s180
      %p187 = scmp.eq.s32.totalorder %s23, 1
      %p188 = por %p186, %p187
      %p189 = scmp.ne.s32.totalorder %s180, %s181
      %p190 = scmp.eq.s32.totalorder %s23, 0
      %p191 = por %p189, %p190
      %p192 = scmp.ne.s32.totalorder %s180, %s181
      %p193 = scmp.eq.s32.totalorder %s24, 1
      %p194 = por %p192, %p193
      %p196 = scmp.ne.s32.totalorder %s181, %s195
      %p197 = scmp.eq.s32.totalorder %s24, 0
      %p198 = por %p196, %p197
      %s199 = ssub.s32 %s18, %s25
      %p200 = scmp.eq.s32.totalorder %s199, 0
      %s202 = sadd.s32 %s201, 1
      %s203 = scalar_select %p200, %s201, %s202
      %p206 = pneg %p200
      %p207 = scmp.eq.s32.totalorder %s18, 1
      %p208 = por %p206, %p207
      %p209 = scmp.ne.s32.totalorder %s201, %s204
      %p210 = scmp.eq.s32.totalorder %s18, 0
      %p211 = por %p209, %p210
      %p212 = scmp.ne.s32.totalorder %s201, %s204
      %p213 = scmp.eq.s32.totalorder %s23, 1
      %p214 = por %p212, %p213
      %p215 = scmp.ne.s32.totalorder %s204, %s205
      %p216 = scmp.eq.s32.totalorder %s23, 0
      %p217 = por %p215, %p216
      %p218 = scmp.ne.s32.totalorder %s204, %s205
      %p219 = scmp.eq.s32.totalorder %s24, 1
      %p220 = por %p218, %p219
      %p222 = scmp.ne.s32.totalorder %s205, %s221
      %p223 = scmp.eq.s32.totalorder %s24, 0
      %p224 = por %p222, %p223
      %p225 = scmp.le.s32.totalorder 1, %s18
      %p226 = scmp.lt.s32.totalorder %s18, 3
      %p227 = pnand %p225, %p226
      %p228 = pneg %p227
      // Predicated region
      $region9: #{fault_diagnosis_forward.1} parent=5 // pred_check
        _
      $region10: #{fault_diagnosis_forward.1} parent=5 // pred_check_branch
        %230 = sbr.rel (%p227) target = $region12
      $region11: #{fault_diagnosis_forward.1} parent=5 // pred_region
        %s231 = ssub.s32 %s18, 1
        // Predicated region
        $region13: #{fault_diagnosis_forward.1} parent=11 // pred_check
          %p232 = pneg %p65
        $region14: #{fault_diagnosis_forward.1} parent=11 // pred_check_branch
          %234 = sbr.rel (%p232) target = $region16
        $region15: #{fault_diagnosis_forward.1} parent=11 // pred_region
          _
        $region16: #{fault_diagnosis_forward.1} parent=11 // pred_fallthru
          _
        // Predicated region
        $region17: #{fault_diagnosis_forward.1} parent=11 // pred_check
          %p235 = pneg %p86
        $region18: #{fault_diagnosis_forward.1} parent=11 // pred_check_branch
          %237 = sbr.rel (%p235) target = $region20
        $region19: #{fault_diagnosis_forward.1} parent=11 // pred_region
          _
        $region20: #{fault_diagnosis_forward.1} parent=11 // pred_fallthru
          _
        // Predicated region
        $region21: #{fault_diagnosis_forward.1} parent=11 // pred_check
          %p238 = pneg %p107
        $region22: #{fault_diagnosis_forward.1} parent=11 // pred_check_branch
          %240 = sbr.rel (%p238) target = $region24
        $region23: #{fault_diagnosis_forward.1} parent=11 // pred_region
          _
        $region24: #{fault_diagnosis_forward.1} parent=11 // pred_fallthru
          _
        // Predicated region
        $region25: #{fault_diagnosis_forward.1} parent=11 // pred_check
          %p241 = pneg %p128
        $region26: #{fault_diagnosis_forward.1} parent=11 // pred_check_branch
          %243 = sbr.rel (%p241) target = $region28
        $region27: #{fault_diagnosis_forward.1} parent=11 // pred_region
          %s245 = ssub.s32 20480, 20480
          %246 = vsyncadd [#allocation6], %s245
          %s247 = sshll.u32 [#allocation5], 4
          %s248 = int_to_ptr.vmem [resolvable:$true] %s247
          %253 = dma.hbm_to_vmem [thread:$0]  %s4, 20480, %s248, [#allocation6], 128, 128, 8
        $region28: #{fault_diagnosis_forward.1} parent=11 // pred_fallthru
          _
        // Predicated region
        $region29: #{fault_diagnosis_forward.1} parent=11 // pred_check
          %p254 = pneg %p149
        $region30: #{fault_diagnosis_forward.1} parent=11 // pred_check_branch
          %256 = sbr.rel (%p254) target = $region32
        $region31: #{fault_diagnosis_forward.1} parent=11 // pred_region
          _
        $region32: #{fault_diagnosis_forward.1} parent=11 // pred_fallthru
          _
        // Predicated region
        $region33: #{fault_diagnosis_forward.1} parent=11 // pred_check
          %p257 = pneg %p170
        $region34: #{fault_diagnosis_forward.1} parent=11 // pred_check_branch
          %259 = sbr.rel (%p257) target = $region36
        $region35: #{fault_diagnosis_forward.1} parent=11 // pred_region
          _
        $region36: #{fault_diagnosis_forward.1} parent=11 // pred_fallthru
          _
        // Predicated region
        $region37: #{fault_diagnosis_forward.1} parent=11 // pred_check
          %p260 = pneg %p191
        $region38: #{fault_diagnosis_forward.1} parent=11 // pred_check_branch
          %262 = sbr.rel (%p260) target = $region40
        $region39: #{fault_diagnosis_forward.1} parent=11 // pred_region
          _
        $region40: #{fault_diagnosis_forward.1} parent=11 // pred_fallthru
          _
      $region12: #{fault_diagnosis_forward.1} parent=5 // pred_fallthru
        _
      %p263 = scmp.lt.s32.totalorder %s18, 2
      // Predicated region
      $region41: #{fault_diagnosis_forward.1} parent=5 // pred_check
        %p264 = pneg %p263
      $region42: #{fault_diagnosis_forward.1} parent=5 // pred_check_branch
        %266 = sbr.rel (%p264) target = $region44
      $region43: #{fault_diagnosis_forward.1} parent=5 // pred_region
        // Predicated region
        $region45: #{fault_diagnosis_forward.1} parent=43 // pred_check
          %p267 = pneg %p38
        $region46: #{fault_diagnosis_forward.1} parent=43 // pred_check_branch
          %269 = sbr.rel (%p267) target = $region48
        $region47: #{fault_diagnosis_forward.1} parent=43 // pred_region
          %p270 = scmp.lt.s32.totalorder %s18, 1
          %s271 = scalar_select %p270, %s18, 1
          %s272 = smul.addr %s271, 2
          %s273 = scalar_lea.vmem %s0, %s272
        $region48: #{fault_diagnosis_forward.1} parent=43 // pred_fallthru
          _
      $region44: #{fault_diagnosis_forward.1} parent=5 // pred_fallthru
        _
      %p274 = scmp.le.s32.totalorder 1, %s18
      %p275 = scmp.lt.s32.totalorder %s18, 3
      %p276 = pnand %p274, %p275
      %p277 = pneg %p276
      // Predicated region
      $region49: #{fault_diagnosis_forward.1} parent=5 // pred_check
        _
      $region50: #{fault_diagnosis_forward.1} parent=5 // pred_check_branch
        %279 = sbr.rel (%p276) target = $region52
      $region51: #{fault_diagnosis_forward.1} parent=5 // pred_region
        %s280 = ssub.s32 %s18, 1
        // Predicated region
        $region53: #{fault_diagnosis_forward.1} parent=51 // pred_check
          %p281 = pneg %p128
        $region54: #{fault_diagnosis_forward.1} parent=51 // pred_check_branch
          %283 = sbr.rel (%p281) target = $region56
        $region55: #{fault_diagnosis_forward.1} parent=51 // pred_region
          %284 = dma.done [#allocation6], 20480
        $region56: #{fault_diagnosis_forward.1} parent=51 // pred_fallthru
          _
        %p285 = scmp.lt.s32.totalorder %s23, 1
        %s286 = scalar_select %p285, %s23, 1
        %s287 = smul.addr %s286, 2
        %s288 = scalar_lea.vmem %s0, %s287
        %p289 = pneg %p44
        %p290 = pneg %p41
        %p291 = pneg %p65
        %p292 = pneg %p62
        %p293 = pneg %p86
        %p294 = pneg %p83
        %p295 = pneg %p107
        %p296 = pneg %p104
        %p297 = pneg %p128
        %p298 = pneg %p125
        %p299 = pneg %p149
        %p300 = pneg %p146
        %p301 = pneg %p170
        %p302 = pneg %p167
        %p303 = pneg %p191
        %p304 = pneg %p188
        %p305 = pneg %p217
        %p306 = pneg %p214
        %s307 = sand.u32 %s204, 1
        %s308 = scalar_lea.sflag [#allocation7], %s307
        %s309 = sand.u32 %s204, 1
        %s310 = scalar_lea.vmem [#allocation8], %s309
        %p311 = scmp.lt.s32.totalorder %s23, 1
        %s312 = scalar_select %p311, %s23, 1
        %s313 = smul.addr %s312, 2
        %s314 = scalar_lea.vmem %s0, %s313
        %v315 = vld [vmem:[%s314] sm:$0x3]
        %v316 = vld [vmem:[%s1] sm:$0xff]
        %v317 = vld [vmem:[%s1 + $0x8] sm:$0x3]
        %v319 = vlaneseq
        %v320 = vshrl.u32 %v319, 7
        %v321 = vsub.s32 0, %v320
        %v322 = vrot.slane %v315, %v321
        %325 = vset.pattern.permute.xlu0 0
        %326 = vperm.xlu0 %325, %v316
        %v327 = vpop.permute.xlu0 %326
        %330 = vset.pattern.permute.xlu0 0
        %331 = vperm.xlu0 %330, %v317
        %v332 = vpop.permute.xlu0 %331
        %v334 = vmul.f32 %v322, %v327
        %v335 = vmul.f32 %v322, %v332
        %v336 = vlaneseq
        %v337 = vshrl.u32 %v336, 7
        %v338 = vsub.s32 1, %v337
        %v339 = vrot.slane %v315, %v338
        %341 = vset.pattern.permute.xlu0 1
        %342 = vperm.xlu0 %341, %v316
        %v343 = vpop.permute.xlu0 %342
        %345 = vset.pattern.permute.xlu0 1
        %346 = vperm.xlu0 %345, %v317
        %v347 = vpop.permute.xlu0 %346
        %v349 = vmul.f32 %v322, %v343
        %v350 = vmul.f32 %v339, %v343
        %v351 = vmul.f32 %v322, %v347
        %v352 = vmul.f32 %v339, %v347
        %357 = vrot.lane.b32.xlu0 %v349, 127
        %v358 = vpop.permute.xlu0 %357
        %359 = vrot.lane.b32.xlu0 %v350, 127
        %v360 = vpop.permute.xlu0 %359
        %361 = vrot.lane.b32.xlu0 %v351, 127
        %v362 = vpop.permute.xlu0 %361
        %363 = vrot.lane.b32.xlu0 %v352, 127
        %v364 = vpop.permute.xlu0 %363
        %vm365 = vcmask 1039360
        %v366 = vsel %vm365, %v358, %v360
        %v367 = vsel %vm365, %v362, %v364
        %v370 = vadd.f32 %v334, %v366
        %v371 = vadd.f32 %v335, %v367
        %372 = vset.pattern.permute.xlu0 2
        %373 = vperm.xlu0 %372, %v316
        %v374 = vpop.permute.xlu0 %373
        %376 = vset.pattern.permute.xlu0 2
        %377 = vperm.xlu0 %376, %v317
        %v378 = vpop.permute.xlu0 %377
        %v380 = vmul.f32 %v322, %v374
        %v381 = vmul.f32 %v339, %v374
        %v382 = vmul.f32 %v322, %v378
        %v383 = vmul.f32 %v339, %v378
        %388 = vrot.lane.b32.xlu0 %v380, 126
        %v389 = vpop.permute.xlu0 %388
        %390 = vrot.lane.b32.xlu0 %v381, 126
        %v391 = vpop.permute.xlu0 %390
        %392 = vrot.lane.b32.xlu0 %v382, 126
        %v393 = vpop.permute.xlu0 %392
        %394 = vrot.lane.b32.xlu0 %v383, 126
        %v395 = vpop.permute.xlu0 %394
        %vm396 = vcmask 1031168
        %v397 = vsel %vm396, %v389, %v391
        %v398 = vsel %vm396, %v393, %v395
        %v401 = vadd.f32 %v370, %v397
        %v402 = vadd.f32 %v371, %v398
        %403 = vset.pattern.permute.xlu0 3
        %404 = vperm.xlu0 %403, %v316
        %v405 = vpop.permute.xlu0 %404
        %407 = vset.pattern.permute.xlu0 3
        %408 = vperm.xlu0 %407, %v317
        %v409 = vpop.permute.xlu0 %408
        %v411 = vadd.f32 %v401, %v405
        %v412 = vadd.f32 %v402, %v409
        %vm413 = vcmp.gt.f32.partialorder %v411, 0.0
        %vm414 = vcmp.gt.f32.partialorder %v412, 0.0
        %v415 = vmul.f32 %v411, 1.442695
        %v416 = vpow.pop %v415
        %v417 = vmul.f32 %v412, 1.442695
        %v418 = vpow.pop %v417
        %v419 = vsub.f32 %v416, 1.0
        %v420 = vsub.f32 %v418, 1.0
        %v421 = vmul.f32 %v419, 1.6732632
        %v422 = vmul.f32 %v420, 1.6732632
        %v423 = vsel %vm413, %v411, %v421
        %v424 = vsel %vm414, %v412, %v422
        %v425 = vmul.f32 %v423, 1.050701
        %v426 = vmul.f32 %v424, 1.050701
        %427 = vst [vmem:[#allocation2] sm:$0xff] 0.0
        %428 = vst [vmem:[#allocation2 + $0x8] sm:$0xff] 0.0
        %429 = vst [vmem:[#allocation2 + $0x10] sm:$0xff] 0.0
        %430 = vst [vmem:[#allocation2 + $0x18] sm:$0xff] 0.0
        %431 = vst [vmem:[#allocation2 + $0x20] sm:$0xff] 0.0
        %432 = vst [vmem:[#allocation2 + $0x28] sm:$0xff] 0.0
        %433 = vst [vmem:[#allocation2 + $0x30] sm:$0xff] 0.0
        %434 = vst [vmem:[#allocation2 + $0x38] sm:$0xff] 0.0
        %435 = vst [vmem:[#allocation2 + $0x40] sm:$0x7f] 0.0
        %438 = vrot.lane.b32.xlu0 %v425, 3
        %v439 = vpop.permute.xlu0 %438
        %440 = vrot.lane.b32.xlu0 %v426, 3
        %v441 = vpop.permute.xlu0 %440
        %vm444 = vcmask 1047576
        %445 = vst.msk [vmem:[#allocation2] sm:$0xff] %vm444, %v439
        %vm446 = vcmask 1041432
        %447 = vst.msk [vmem:[#allocation2 + $0x8] sm:$0x3] %vm446, %v441
        %448 = vrot.lane.b32.xlu0 %v425, 2
        %v449 = vpop.permute.xlu0 %448
        %450 = vrot.lane.b32.xlu0 %v426, 2
        %v451 = vpop.permute.xlu0 %450
        %vm454 = vcmask 1047568
        %455 = vst.msk [vmem:[#allocation2 + $0xa] sm:$0xff] %vm454, %v449
        %vm456 = vcmask 1041424
        %457 = vst.msk [vmem:[#allocation2 + $0x12] sm:$0x3] %vm456, %v451
        %458 = vrot.lane.b32.xlu0 %v425, 1
        %v459 = vpop.permute.xlu0 %458
        %460 = vrot.lane.b32.xlu0 %v426, 1
        %v461 = vpop.permute.xlu0 %460
        %vm464 = vcmask 1047560
        %465 = vst.msk [vmem:[#allocation2 + $0x14] sm:$0xff] %vm464, %v459
        %vm466 = vcmask 1041416
        %467 = vst.msk [vmem:[#allocation2 + $0x1c] sm:$0x3] %vm466, %v461
        %468 = vst [vmem:[#allocation2 + $0x1e] sm:$0xff] %v425
        %469 = vst [vmem:[#allocation2 + $0x26] sm:$0x3] %v426
        %470 = vrot.lane.b32.xlu0 %v425, 127
        %v471 = vpop.permute.xlu0 %470
        %472 = vrot.lane.b32.xlu0 %v426, 127
        %v473 = vpop.permute.xlu0 %472
        %476 = vst.msk [vmem:[#allocation2 + $0x28] sm:$0xff] %vm365, %v471
        %vm477 = vcmask 1033216
        %478 = vst.msk [vmem:[#allocation2 + $0x30] sm:$0x3] %vm477, %v473
        %479 = vrot.lane.b32.xlu0 %v425, 126
        %v480 = vpop.permute.xlu0 %479
        %481 = vrot.lane.b32.xlu0 %v426, 126
        %v482 = vpop.permute.xlu0 %481
        %485 = vst.msk [vmem:[#allocation2 + $0x32] sm:$0xff] %vm396, %v480
        %vm486 = vcmask 1025024
        %487 = vst.msk [vmem:[#allocation2 + $0x3a] sm:$0x3] %vm486, %v482
        %488 = vrot.lane.b32.xlu0 %v425, 125
        %v489 = vpop.permute.xlu0 %488
        %490 = vrot.lane.b32.xlu0 %v426, 125
        %v491 = vpop.permute.xlu0 %490
        %vm494 = vcmask 1022976
        %495 = vst.msk [vmem:[#allocation2 + $0x3c] sm:$0xff] %vm494, %v489
        %vm496 = vcmask 1016832
        %497 = vst.msk [vmem:[#allocation2 + $0x44] sm:$0x3] %vm496, %v491
        %498 = vst [vmem:[#allocation2 + $0x46] sm:$0x1] 1.0
        %v499 = vld [vmem:[%s2] sm:$0xff]
        %v500 = vld [vmem:[%s2 + $0x8] sm:$0xff]
        %v501 = vld [vmem:[%s2 + $0x10] sm:$0xff]
        %v502 = vld [vmem:[%s2 + $0x18] sm:$0x3f]
        %v503 = vld [vmem:[#allocation2] sm:$0xff]
        %v504 = vld [vmem:[#allocation2 + $0x8] sm:$0xff]
        %v505 = vld [vmem:[#allocation2 + $0x10] sm:$0xff]
        %v506 = vld [vmem:[#allocation2 + $0x18] sm:$0xff]
        %v507 = vld [vmem:[#allocation2 + $0x20] sm:$0xff]
        %v508 = vld [vmem:[#allocation2 + $0x28] sm:$0xff]
        %v509 = vld [vmem:[#allocation2 + $0x30] sm:$0xff]
        %v510 = vld [vmem:[#allocation2 + $0x38] sm:$0xff]
        %v511 = vld [vmem:[#allocation2 + $0x40] sm:$0x7f]
        %vm512 = vcmask 580608
        %v514 = vsel %vm512, %v499, 0
        %v517 = vsel %vm512, %v500, 0
        %v520 = vsel %vm512, %v501, 0
        %v523 = vsel %vm512, %v502, 0
        %vm525 = vcmask 1046528
        %v527 = vsel %vm525, %v511, 0
        %529 = vmatprep.subr.mxu0 0.0
        %530 = vmatpush1.msra.mxu0 %v503
        %531 = vmatprep.subr.mxu0 0.0
        %532 = vmatpush1.msra.mxu0 %v504
        %533 = vmatprep.subr.mxu0 0.0
        %534 = vmatpush1.msra.mxu0 %v505
        %535 = vmatprep.subr.mxu0 0.0
        %536 = vmatpush1.msra.mxu0 %v506
        %537 = vmatprep.subr.mxu0 0.0
        %538 = vmatpush1.msra.mxu0 %v507
        %539 = vmatprep.subr.mxu0 0.0
        %540 = vmatpush1.msra.mxu0 %v508
        %541 = vmatprep.subr.mxu0 0.0
        %542 = vmatpush1.msra.mxu0 %v509
        %543 = vmatprep.subr.mxu0 0.0
        %544 = vmatpush1.msra.mxu0 %v510
        %545 = vmatprep.subr.mxu0 0.0
        %546 = vmatpush1.msra.mxu0 %v527
        %547 = vmatprep.subr.mxu0 0.0
        %548 = vmatpush1.msra.mxu0 0.0
        %549 = vmatprep.subr.mxu0 0.0
        %550 = vmatpush1.msra.mxu0 0.0
        %551 = vmatprep.subr.mxu0 0.0
        %552 = vmatpush1.msra.mxu0 0.0
        %553 = vmatprep.subr.mxu0 0.0
        %554 = vmatpush1.msra.mxu0 0.0
        %555 = vmatprep.subr.mxu0 0.0
        %556 = vmatpush1.msra.mxu0 0.0
        %557 = vmatprep.subr.mxu0 0.0
        %558 = vmatpush1.msra.mxu0 0.0
        %559 = vmatprep.subr.mxu0 0.0
        %560 = vmatpush1.msra.mxu0 0.0
        %561 = vmatprep.subr.mxu0 0.0
        %562 = vmatpush1.msra.mxu0 0.0
        %563 = vmatprep.subr.mxu0 0.0
        %564 = vmatpush1.msra.mxu0 0.0
        %565 = vmatprep.subr.mxu0 0.0
        %566 = vmatpush1.msra.mxu0 0.0
        %567 = vmatprep.subr.mxu0 0.0
        %568 = vmatpush1.msra.mxu0 0.0
        %569 = vmatprep.subr.mxu0 0.0
        %570 = vmatpush1.msra.mxu0 0.0
        %571 = vmatprep.subr.mxu0 0.0
        %572 = vmatpush1.msra.mxu0 0.0
        %573 = vmatprep.subr.mxu0 0.0
        %574 = vmatpush1.msra.mxu0 0.0
        %575 = vmatprep.subr.mxu0 0.0
        %576 = vmatpush1.msra.mxu0 0.0
        %577 = vmatprep.subr.mxu0 0.0
        %578 = vmatpush1.msra.mxu0 0.0
        %579 = vmatprep.subr.mxu0 0.0
        %580 = vmatpush1.msra.mxu0 0.0
        %581 = vmatprep.subr.mxu0 0.0
        %582 = vmatpush1.msra.mxu0 0.0
        %583 = vmatprep.subr.mxu0 0.0
        %584 = vmatpush1.msra.mxu0 0.0
        %585 = vmatprep.subr.mxu0 0.0
        %586 = vmatpush1.msra.mxu0 0.0
        %587 = vmatprep.subr.mxu0 0.0
        %588 = vmatpush1.msra.mxu0 0.0
        %589 = vmatprep.subr.mxu0 0.0
        %590 = vmatpush1.msra.mxu0 0.0
        %591 = vmatprep.subr.mxu0 0.0
        %592 = vmatpush1.msra.mxu0 0.0
        %593 = vmatprep.mubr.f32.mxu0 0.0
        %594 = vmatmul.mubr.f32.gmra.mrb[0].mxu0 %v514
        %v595 = vpop.f32.mrb[0].mxu0
        %v596 = vadd.f32 0.0, %v595
        %v597 = vpop.f32.mrb[0].mxu0
        %598 = vmatprep.mubr.f32.mxu0 0.0
        %599 = vmatmul.mubr.f32.gmra.mrb[0].mxu0 %v517
        %v600 = vpop.f32.mrb[0].mxu0
        %v601 = vadd.f32 0.0, %v600
        %v602 = vpop.f32.mrb[0].mxu0
        %603 = vmatprep.mubr.f32.mxu0 0.0
        %604 = vmatmul.mubr.f32.gmra.mrb[0].mxu0 %v520
        %v605 = vpop.f32.mrb[0].mxu0
        %v606 = vadd.f32 0.0, %v605
        %v607 = vpop.f32.mrb[0].mxu0
        %608 = vmatprep.mubr.f32.mxu0 0.0
        %609 = vmatmul.mubr.f32.gmra.mrb[0].mxu0 %v523
        %v610 = vpop.f32.mrb[0].mxu0
        %v611 = vadd.f32 0.0, %v610
        %v612 = vpop.f32.mrb[0].mxu0
        %613 = vdwg.mxu0
        %vm614 = vcmp.gt.f32.partialorder %v596, 0.0
        %vm615 = vcmp.gt.f32.partialorder %v601, 0.0
        %v616 = vmul.f32 %v596, 1.442695
        %v617 = vpow.pop %v616
        %v618 = vmul.f32 %v601, 1.442695
        %v619 = vpow.pop %v618
        %v620 = vsub.f32 %v617, 1.0
        %v621 = vsub.f32 %v619, 1.0
        %v622 = vmul.f32 %v620, 1.6732632
        %v623 = vmul.f32 %v621, 1.6732632
        %v624 = vsel %vm614, %v596, %v622
        %v625 = vsel %vm615, %v601, %v623
        %v626 = vmul.f32 %v624, 1.050701
        %v627 = vmul.f32 %v625, 1.050701
        %vm628 = vcmp.gt.f32.partialorder %v606, 0.0
        %v629 = vmul.f32 %v606, 1.442695
        %v630 = vpow.pop %v629
        %v631 = vsub.f32 %v630, 1.0
        %v632 = vmul.f32 %v631, 1.6732632
        %v633 = vsel %vm628, %v606, %v632
        %v634 = vmul.f32 %v633, 1.050701
        %vm637 = vcmask 1045504
        %v638 = vrot.slane %v627, 2
        %v639 = vrot.slane %v634, 2
        %v640 = vsel %vm637, %v638, %v639
        %v643 = vadd.f32 %v626, %v640
        %v644 = vadd.f32 %v627, %v639
        %vm647 = vcmask 1043456
        %v648 = vrot.slane %v606, 4
        %v649 = vrot.slane %v611, 4
        %v650 = vsel %vm647, %v648, %v649
        %v653 = vadd.f32 %v643, %v650
        %v654 = vadd.f32 %v644, %v649
        %v655 = vadd.f32 %v653, %v425
        %v656 = vadd.f32 %v654, %v426
        %vm657 = vcmp.gt.f32.partialorder %v655, 0.0
        %vm658 = vcmp.gt.f32.partialorder %v656, 0.0
        %v659 = vmul.f32 %v655, 1.442695
        %v660 = vpow.pop %v659
        %v661 = vmul.f32 %v656, 1.442695
        %v662 = vpow.pop %v661
        %v663 = vsub.f32 %v660, 1.0
        %v664 = vsub.f32 %v662, 1.0
        %v665 = vmul.f32 %v663, 1.6732632
        %v666 = vmul.f32 %v664, 1.6732632
        %v667 = vsel %vm657, %v655, %v665
        %v668 = vsel %vm658, %v656, %v666
        %v669 = vmul.f32 %v667, 1.050701
        %v670 = vmul.f32 %v668, 1.050701
        %v671 = vlaneseq
        %v672 = vshrl.u32 %v671, 7
        %v673 = vadd.s32 %v672, 8
        %v674 = vadd.s32 %v672, 16
        %v675 = vadd.s32 %v672, 24
        %v676 = vadd.s32 %v672, 32
        %v677 = vadd.s32 %v672, 40
        %v678 = vadd.s32 %v672, 48
        %v679 = vadd.s32 %v672, 56
        %v680 = vadd.s32 %v672, 64
        %v681 = vadd.s32 %v672, 72
        %v682 = vadd.s32 %v672, 80
        %v683 = vadd.s32 %v672, 88
        %v684 = vadd.s32 %v672, 96
        %v685 = vadd.s32 %v672, 104
        %v686 = vadd.s32 %v672, 112
        %v687 = vadd.s32 %v672, 120
        %v688 = vlaneseq
        %v689 = vand.u32 %v688, 127
        %v690 = vmul.u32 %v689, 2
        %vm691 = vcmp.eq.s32.totalorder %v672, %v690
        %vm692 = vcmp.eq.s32.totalorder %v673, %v690
        %vm693 = vcmp.eq.s32.totalorder %v674, %v690
        %vm694 = vcmp.eq.s32.totalorder %v675, %v690
        %vm695 = vcmp.eq.s32.totalorder %v676, %v690
        %vm696 = vcmp.eq.s32.totalorder %v677, %v690
        %vm697 = vcmp.eq.s32.totalorder %v678, %v690
        %vm698 = vcmp.eq.s32.totalorder %v679, %v690
        %vm699 = vcmp.eq.s32.totalorder %v680, %v690
        %vm700 = vcmp.eq.s32.totalorder %v681, %v690
        %vm701 = vcmp.eq.s32.totalorder %v682, %v690
        %vm702 = vcmp.eq.s32.totalorder %v683, %v690
        %vm703 = vcmp.eq.s32.totalorder %v684, %v690
        %vm704 = vcmp.eq.s32.totalorder %v685, %v690
        %vm705 = vcmp.eq.s32.totalorder %v686, %v690
        %vm706 = vcmp.eq.s32.totalorder %v687, %v690
        %v707 = vsel %vm691, 1, 0
        %v708 = vsel %vm692, 1, 0
        %v709 = vsel %vm693, 1, 0
        %v710 = vsel %vm694, 1, 0
        %v711 = vsel %vm695, 1, 0
        %v712 = vsel %vm696, 1, 0
        %v713 = vsel %vm697, 1, 0
        %v714 = vsel %vm698, 1, 0
        %v715 = vsel %vm699, 1, 0
        %v716 = vsel %vm700, 1, 0
        %v717 = vsel %vm701, 1, 0
        %v718 = vsel %vm702, 1, 0
        %v719 = vsel %vm703, 1, 0
        %v720 = vsel %vm704, 1, 0
        %v721 = vsel %vm705, 1, 0
        %v722 = vsel %vm706, 1, 0
        %v723 = vcvt.s32.f32 %v707
        %v724 = vcvt.s32.f32 %v708
        %v725 = vcvt.s32.f32 %v709
        %v726 = vcvt.s32.f32 %v710
        %v727 = vcvt.s32.f32 %v711
        %v728 = vcvt.s32.f32 %v712
        %v729 = vcvt.s32.f32 %v713
        %v730 = vcvt.s32.f32 %v714
        %v731 = vcvt.s32.f32 %v715
        %v732 = vcvt.s32.f32 %v716
        %v733 = vcvt.s32.f32 %v717
        %v734 = vcvt.s32.f32 %v718
        %v735 = vcvt.s32.f32 %v719
        %v736 = vcvt.s32.f32 %v720
        %v737 = vcvt.s32.f32 %v721
        %v738 = vcvt.s32.f32 %v722
        %v739 = vadd.s32 %v690, 1
        %vm740 = vcmp.eq.s32.totalorder %v672, %v739
        %vm741 = vcmp.eq.s32.totalorder %v673, %v739
        %vm742 = vcmp.eq.s32.totalorder %v674, %v739
        %vm743 = vcmp.eq.s32.totalorder %v675, %v739
        %vm744 = vcmp.eq.s32.totalorder %v676, %v739
        %vm745 = vcmp.eq.s32.totalorder %v677, %v739
        %vm746 = vcmp.eq.s32.totalorder %v678, %v739
        %vm747 = vcmp.eq.s32.totalorder %v679, %v739
        %vm748 = vcmp.eq.s32.totalorder %v680, %v739
        %vm749 = vcmp.eq.s32.totalorder %v681, %v739
        %vm750 = vcmp.eq.s32.totalorder %v682, %v739
        %vm751 = vcmp.eq.s32.totalorder %v683, %v739
        %vm752 = vcmp.eq.s32.totalorder %v684, %v739
        %vm753 = vcmp.eq.s32.totalorder %v685, %v739
        %vm754 = vcmp.eq.s32.totalorder %v686, %v739
        %vm755 = vcmp.eq.s32.totalorder %v687, %v739
        %v756 = vsel %vm740, 1, 0
        %v757 = vsel %vm741, 1, 0
        %v758 = vsel %vm742, 1, 0
        %v759 = vsel %vm743, 1, 0
        %v760 = vsel %vm744, 1, 0
        %v761 = vsel %vm745, 1, 0
        %v762 = vsel %vm746, 1, 0
        %v763 = vsel %vm747, 1, 0
        %v764 = vsel %vm748, 1, 0
        %v765 = vsel %vm749, 1, 0
        %v766 = vsel %vm750, 1, 0
        %v767 = vsel %vm751, 1, 0
        %v768 = vsel %vm752, 1, 0
        %v769 = vsel %vm753, 1, 0
        %v770 = vsel %vm754, 1, 0
        %v771 = vsel %vm755, 1, 0
        %v772 = vcvt.s32.f32 %v756
        %v773 = vcvt.s32.f32 %v757
        %v774 = vcvt.s32.f32 %v758
        %v775 = vcvt.s32.f32 %v759
        %v776 = vcvt.s32.f32 %v760
        %v777 = vcvt.s32.f32 %v761
        %v778 = vcvt.s32.f32 %v762
        %v779 = vcvt.s32.f32 %v763
        %v780 = vcvt.s32.f32 %v764
        %v781 = vcvt.s32.f32 %v765
        %v782 = vcvt.s32.f32 %v766
        %v783 = vcvt.s32.f32 %v767
        %v784 = vcvt.s32.f32 %v768
        %v785 = vcvt.s32.f32 %v769
        %v786 = vcvt.s32.f32 %v770
        %v787 = vcvt.s32.f32 %v771
        %788 = vmatprep.subr.mxu0 0.0
        %789 = vmatpush1.msra.mxu0 %v723
        %790 = vmatprep.subr.mxu0 0.0
        %791 = vmatpush1.msra.mxu0 %v724
        %792 = vmatprep.subr.mxu0 0.0
        %793 = vmatpush1.msra.mxu0 %v725
        %794 = vmatprep.subr.mxu0 0.0
        %795 = vmatpush1.msra.mxu0 %v726
        %796 = vmatprep.subr.mxu0 0.0
        %797 = vmatpush1.msra.mxu0 %v727
        %798 = vmatprep.subr.mxu0 0.0
        %799 = vmatpush1.msra.mxu0 %v728
        %800 = vmatprep.subr.mxu0 0.0
        %801 = vmatpush1.msra.mxu0 %v729
        %802 = vmatprep.subr.mxu0 0.0
        %803 = vmatpush1.msra.mxu0 %v730
        %804 = vmatprep.subr.mxu0 0.0
        %805 = vmatpush1.msra.mxu0 %v731
        %806 = vmatprep.subr.mxu0 0.0
        %807 = vmatpush1.msra.mxu0 %v732
        %808 = vmatprep.subr.mxu0 0.0
        %809 = vmatpush1.msra.mxu0 %v733
        %810 = vmatprep.subr.mxu0 0.0
        %811 = vmatpush1.msra.mxu0 %v734
        %812 = vmatprep.subr.mxu0 0.0
        %813 = vmatpush1.msra.mxu0 %v735
        %814 = vmatprep.subr.mxu0 0.0
        %815 = vmatpush1.msra.mxu0 %v736
        %816 = vmatprep.subr.mxu0 0.0
        %817 = vmatpush1.msra.mxu0 %v737
        %818 = vmatprep.subr.mxu0 0.0
        %819 = vmatpush1.msra.mxu0 %v738
        %820 = vmatprep.subr.mxu0 0.0
        %821 = vmatpush1.msra.mxu0 0.0
        %822 = vmatprep.subr.mxu0 0.0
        %823 = vmatpush1.msra.mxu0 0.0
        %824 = vmatprep.subr.mxu0 0.0
        %825 = vmatpush1.msra.mxu0 0.0
        %826 = vmatprep.subr.mxu0 0.0
        %827 = vmatpush1.msra.mxu0 0.0
        %828 = vmatprep.subr.mxu0 0.0
        %829 = vmatpush1.msra.mxu0 0.0
        %830 = vmatprep.subr.mxu0 0.0
        %831 = vmatpush1.msra.mxu0 0.0
        %832 = vmatprep.subr.mxu0 0.0
        %833 = vmatpush1.msra.mxu0 0.0
        %834 = vmatprep.subr.mxu0 0.0
        %835 = vmatpush1.msra.mxu0 0.0
        %836 = vmatprep.subr.mxu0 0.0
        %837 = vmatpush1.msra.mxu0 0.0
        %838 = vmatprep.subr.mxu0 0.0
        %839 = vmatpush1.msra.mxu0 0.0
        %840 = vmatprep.subr.mxu0 0.0
        %841 = vmatpush1.msra.mxu0 0.0
        %842 = vmatprep.subr.mxu0 0.0
        %843 = vmatpush1.msra.mxu0 0.0
        %844 = vmatprep.subr.mxu0 0.0
        %845 = vmatpush1.msra.mxu0 0.0
        %846 = vmatprep.subr.mxu0 0.0
        %847 = vmatpush1.msra.mxu0 0.0
        %848 = vmatprep.subr.mxu0 0.0
        %849 = vmatpush1.msra.mxu0 0.0
        %850 = vmatprep.subr.mxu0 0.0
        %851 = vmatpush1.msra.mxu0 0.0
        %852 = vmatprep.mubr.f32.mxu0 0.0
        %853 = vmatmul.mubr.f32.gmra.mrb[0].mxu0 %v669
        %v854 = vpop.f32.mrb[0].mxu0
        %v855 = vadd.f32 0.0, %v854
        %v856 = vpop.f32.mrb[0].mxu0
        %857 = vmatprep.mubr.f32.mxu0 0.0
        %858 = vmatmul.mubr.f32.gmra.mrb[0].mxu0 %v670
        %v859 = vpop.f32.mrb[0].mxu0
        %v860 = vadd.f32 0.0, %v859
        %v861 = vpop.f32.mrb[0].mxu0
        %862 = vdwg.mxu0
        %863 = vmatprep.subr.mxu0 0.0
        %864 = vmatpush1.msra.mxu0 %v772
        %865 = vmatprep.subr.mxu0 0.0
        %866 = vmatpush1.msra.mxu0 %v773
        %867 = vmatprep.subr.mxu0 0.0
        %868 = vmatpush1.msra.mxu0 %v774
        %869 = vmatprep.subr.mxu0 0.0
        %870 = vmatpush1.msra.mxu0 %v775
        %871 = vmatprep.subr.mxu0 0.0
        %872 = vmatpush1.msra.mxu0 %v776
        %873 = vmatprep.subr.mxu0 0.0
        %874 = vmatpush1.msra.mxu0 %v777
        %875 = vmatprep.subr.mxu0 0.0
        %876 = vmatpush1.msra.mxu0 %v778
        %877 = vmatprep.subr.mxu0 0.0
        %878 = vmatpush1.msra.mxu0 %v779
        %879 = vmatprep.subr.mxu0 0.0
        %880 = vmatpush1.msra.mxu0 %v780
        %881 = vmatprep.subr.mxu0 0.0
        %882 = vmatpush1.msra.mxu0 %v781
        %883 = vmatprep.subr.mxu0 0.0
        %884 = vmatpush1.msra.mxu0 %v782
        %885 = vmatprep.subr.mxu0 0.0
        %886 = vmatpush1.msra.mxu0 %v783
        %887 = vmatprep.subr.mxu0 0.0
        %888 = vmatpush1.msra.mxu0 %v784
        %889 = vmatprep.subr.mxu0 0.0
        %890 = vmatpush1.msra.mxu0 %v785
        %891 = vmatprep.subr.mxu0 0.0
        %892 = vmatpush1.msra.mxu0 %v786
        %893 = vmatprep.subr.mxu0 0.0
        %894 = vmatpush1.msra.mxu0 %v787
        %895 = vmatprep.subr.mxu0 0.0
        %896 = vmatpush1.msra.mxu0 0.0
        %897 = vmatprep.subr.mxu0 0.0
        %898 = vmatpush1.msra.mxu0 0.0
        %899 = vmatprep.subr.mxu0 0.0
        %900 = vmatpush1.msra.mxu0 0.0
        %901 = vmatprep.subr.mxu0 0.0
        %902 = vmatpush1.msra.mxu0 0.0
        %903 = vmatprep.subr.mxu0 0.0
        %904 = vmatpush1.msra.mxu0 0.0
        %905 = vmatprep.subr.mxu0 0.0
        %906 = vmatpush1.msra.mxu0 0.0
        %907 = vmatprep.subr.mxu0 0.0
        %908 = vmatpush1.msra.mxu0 0.0
        %909 = vmatprep.subr.mxu0 0.0
        %910 = vmatpush1.msra.mxu0 0.0
        %911 = vmatprep.subr.mxu0 0.0
        %912 = vmatpush1.msra.mxu0 0.0
        %913 = vmatprep.subr.mxu0 0.0
        %914 = vmatpush1.msra.mxu0 0.0
        %915 = vmatprep.subr.mxu0 0.0
        %916 = vmatpush1.msra.mxu0 0.0
        %917 = vmatprep.subr.mxu0 0.0
        %918 = vmatpush1.msra.mxu0 0.0
        %919 = vmatprep.subr.mxu0 0.0
        %920 = vmatpush1.msra.mxu0 0.0
        %921 = vmatprep.subr.mxu0 0.0
        %922 = vmatpush1.msra.mxu0 0.0
        %923 = vmatprep.subr.mxu0 0.0
        %924 = vmatpush1.msra.mxu0 0.0
        %925 = vmatprep.subr.mxu0 0.0
        %926 = vmatpush1.msra.mxu0 0.0
        %927 = vmatprep.mubr.f32.mxu0 0.0
        %928 = vmatmul.mubr.f32.gmra.mrb[0].mxu0 %v669
        %v929 = vpop.f32.mrb[0].mxu0
        %v930 = vadd.f32 0.0, %v929
        %v931 = vpop.f32.mrb[0].mxu0
        %932 = vmatprep.mubr.f32.mxu0 0.0
        %933 = vmatmul.mubr.f32.gmra.mrb[0].mxu0 %v670
        %v934 = vpop.f32.mrb[0].mxu0
        %v935 = vadd.f32 0.0, %v934
        %v936 = vpop.f32.mrb[0].mxu0
        %937 = vdwg.mxu0
        %v938 = vmax.f32 %v855, %v930
        %v939 = vmax.f32 %v860, %v935
        %vm940 = vcmask 523264
        %941 = vst.msk [vmem:[#allocation3] sm:$0xff] %vm940, 0.0
        %942 = vst.msk [vmem:[#allocation3 + $0x8] sm:$0xff] %vm940, 0.0
        %943 = vst.msk [vmem:[#allocation3 + $0x10] sm:$0xff] %vm940, 0.0
        %944 = vst.msk [vmem:[#allocation3 + $0x18] sm:$0xff] %vm940, 0.0
        %945 = vst.msk [vmem:[#allocation3 + $0x20] sm:$0xff] %vm940, 0.0
        %946 = vst.msk [vmem:[#allocation3 + $0x28] sm:$0xff] %vm940, 0.0
        %947 = vst.msk [vmem:[#allocation3 + $0x30] sm:$0xff] %vm940, 0.0
        %948 = vst.msk [vmem:[#allocation3 + $0x38] sm:$0xff] %vm940, 0.0
        %vm949 = vcmask 522240
        %950 = vst.msk [vmem:[#allocation3 + $0x40] sm:$0x7f] %vm949, 0.0
        %953 = vrot.lane.b32.xlu0 %v938, 3
        %v954 = vpop.permute.xlu0 %953
        %955 = vrot.lane.b32.xlu0 %v939, 3
        %v956 = vpop.permute.xlu0 %955
        %vm959 = vcmask 523288
        %960 = vst.msk [vmem:[#allocation3] sm:$0xff] %vm959, %v954
        %vm961 = vcmask 517144
        %962 = vst.msk [vmem:[#allocation3 + $0x8] sm:$0x3] %vm961, %v956
        %963 = vrot.lane.b32.xlu0 %v938, 2
        %v964 = vpop.permute.xlu0 %963
        %965 = vrot.lane.b32.xlu0 %v939, 2
        %v966 = vpop.permute.xlu0 %965
        %vm969 = vcmask 523280
        %970 = vst.msk [vmem:[#allocation3 + $0xa] sm:$0xff] %vm969, %v964
        %vm971 = vcmask 517136
        %972 = vst.msk [vmem:[#allocation3 + $0x12] sm:$0x3] %vm971, %v966
        %973 = vrot.lane.b32.xlu0 %v938, 1
        %v974 = vpop.permute.xlu0 %973
        %975 = vrot.lane.b32.xlu0 %v939, 1
        %v976 = vpop.permute.xlu0 %975
        %vm979 = vcmask 523272
        %980 = vst.msk [vmem:[#allocation3 + $0x14] sm:$0xff] %vm979, %v974
        %vm981 = vcmask 517128
        %982 = vst.msk [vmem:[#allocation3 + $0x1c] sm:$0x3] %vm981, %v976
        %983 = vst.msk [vmem:[#allocation3 + $0x1e] sm:$0xff] %vm940, %v938
        %vm984 = vcmask 517120
        %985 = vst.msk [vmem:[#allocation3 + $0x26] sm:$0x3] %vm984, %v939
        %986 = vrot.lane.b32.xlu0 %v938, 127
        %v987 = vpop.permute.xlu0 %986
        %988 = vrot.lane.b32.xlu0 %v939, 127
        %v989 = vpop.permute.xlu0 %988
        %vm992 = vcmask 515072
        %993 = vst.msk [vmem:[#allocation3 + $0x28] sm:$0xff] %vm992, %v987
        %vm994 = vcmask 508928
        %995 = vst.msk [vmem:[#allocation3 + $0x30] sm:$0x3] %vm994, %v989
        %996 = vrot.lane.b32.xlu0 %v938, 126
        %v997 = vpop.permute.xlu0 %996
        %998 = vrot.lane.b32.xlu0 %v939, 126
        %v999 = vpop.permute.xlu0 %998
        %vm1002 = vcmask 506880
        %1003 = vst.msk [vmem:[#allocation3 + $0x32] sm:$0xff] %vm1002, %v997
        %vm1004 = vcmask 500736
        %1005 = vst.msk [vmem:[#allocation3 + $0x3a] sm:$0x3] %vm1004, %v999
        %1006 = vrot.lane.b32.xlu0 %v938, 125
        %v1007 = vpop.permute.xlu0 %1006
        %1008 = vrot.lane.b32.xlu0 %v939, 125
        %v1009 = vpop.permute.xlu0 %1008
        %vm1012 = vcmask 498688
        %1013 = vst.msk [vmem:[#allocation3 + $0x3c] sm:$0xff] %vm1012, %v1007
        %vm1014 = vcmask 492544
        %1015 = vst.msk [vmem:[#allocation3 + $0x44] sm:$0x3] %vm1014, %v1009
        %vm1016 = vcmask 516096
        %1017 = vst.msk [vmem:[#allocation3 + $0x46] sm:$0x1] %vm1016, 1.0
        %v1018 = vld [vmem:[%s3] sm:$0xff]
        %v1019 = vld [vmem:[%s3 + $0x8] sm:$0xff]
        %v1020 = vld [vmem:[%s3 + $0x10] sm:$0xff]
        %v1021 = vld [vmem:[%s3 + $0x18] sm:$0xff]
        %v1022 = vld [vmem:[%s3 + $0x20] sm:$0xff]
        %v1023 = vld [vmem:[%s3 + $0x28] sm:$0xff]
        %v1024 = vld [vmem:[%s3 + $0x30] sm:$0xff]
        %v1025 = vld [vmem:[%s3 + $0x38] sm:$0xff]
        %v1026 = vld [vmem:[%s3 + $0x40] sm:$0xff]
        %v1027 = vld [vmem:[%s3 + $0x48] sm:$0xff]
        %v1028 = vld [vmem:[#allocation3] sm:$0xff]
        %v1029 = vld [vmem:[#allocation3 + $0x8] sm:$0xff]
        %v1030 = vld [vmem:[#allocation3 + $0x10] sm:$0xff]
        %v1031 = vld [vmem:[#allocation3 + $0x18] sm:$0xff]
        %v1032 = vld [vmem:[#allocation3 + $0x20] sm:$0xff]
        %v1033 = vld [vmem:[#allocation3 + $0x28] sm:$0xff]
        %v1034 = vld [vmem:[#allocation3 + $0x30] sm:$0xff]
        %v1035 = vld [vmem:[#allocation3 + $0x38] sm:$0xff]
        %v1036 = vld [vmem:[#allocation3 + $0x40] sm:$0x7f]
        %v1038 = vsel %vm512, %v1018, 0
        %v1041 = vsel %vm512, %v1019, 0
        %v1044 = vsel %vm512, %v1020, 0
        %v1047 = vsel %vm512, %v1021, 0
        %v1050 = vsel %vm512, %v1022, 0
        %v1053 = vsel %vm512, %v1023, 0
        %v1056 = vsel %vm512, %v1024, 0
        %v1059 = vsel %vm512, %v1025, 0
        %v1062 = vsel %vm512, %v1026, 0
        %v1065 = vsel %vm512, %v1027, 0
        %v1068 = vsel %vm525, %v1036, 0
        %1070 = vmatprep.subr.mxu0 0.0
        %1071 = vmatpush1.msra.mxu0 %v1028
        %1072 = vmatprep.subr.mxu0 0.0
        %1073 = vmatpush1.msra.mxu0 %v1029
        %1074 = vmatprep.subr.mxu0 0.0
        %1075 = vmatpush1.msra.mxu0 %v1030
        %1076 = vmatprep.subr.mxu0 0.0
        %1077 = vmatpush1.msra.mxu0 %v1031
        %1078 = vmatprep.subr.mxu0 0.0
        %1079 = vmatpush1.msra.mxu0 %v1032
        %1080 = vmatprep.subr.mxu0 0.0
        %1081 = vmatpush1.msra.mxu0 %v1033
        %1082 = vmatprep.subr.mxu0 0.0
        %1083 = vmatpush1.msra.mxu0 %v1034
        %1084 = vmatprep.subr.mxu0 0.0
        %1085 = vmatpush1.msra.mxu0 %v1035
        %1086 = vmatprep.subr.mxu0 0.0
        %1087 = vmatpush1.msra.mxu0 %v1068
        %1088 = vmatprep.subr.mxu0 0.0
        %1089 = vmatpush1.msra.mxu0 0.0
        %1090 = vmatprep.subr.mxu0 0.0
        %1091 = vmatpush1.msra.mxu0 0.0
        %1092 = vmatprep.subr.mxu0 0.0
        %1093 = vmatpush1.msra.mxu0 0.0
        %1094 = vmatprep.subr.mxu0 0.0
        %1095 = vmatpush1.msra.mxu0 0.0
        %1096 = vmatprep.subr.mxu0 0.0
        %1097 = vmatpush1.msra.mxu0 0.0
        %1098 = vmatprep.subr.mxu0 0.0
        %1099 = vmatpush1.msra.mxu0 0.0
        %1100 = vmatprep.subr.mxu0 0.0
        %1101 = vmatpush1.msra.mxu0 0.0
        %1102 = vmatprep.subr.mxu0 0.0
        %1103 = vmatpush1.msra.mxu0 0.0
        %1104 = vmatprep.subr.mxu0 0.0
        %1105 = vmatpush1.msra.mxu0 0.0
        %1106 = vmatprep.subr.mxu0 0.0
        %1107 = vmatpush1.msra.mxu0 0.0
        %1108 = vmatprep.subr.mxu0 0.0
        %1109 = vmatpush1.msra.mxu0 0.0
        %1110 = vmatprep.subr.mxu0 0.0
        %1111 = vmatpush1.msra.mxu0 0.0
        %1112 = vmatprep.subr.mxu0 0.0
        %1113 = vmatpush1.msra.mxu0 0.0
        %1114 = vmatprep.subr.mxu0 0.0
        %1115 = vmatpush1.msra.mxu0 0.0
        %1116 = vmatprep.subr.mxu0 0.0
        %1117 = vmatpush1.msra.mxu0 0.0
        %1118 = vmatprep.subr.mxu0 0.0
        %1119 = vmatpush1.msra.mxu0 0.0
        %1120 = vmatprep.subr.mxu0 0.0
        %1121 = vmatpush1.msra.mxu0 0.0
        %1122 = vmatprep.subr.mxu0 0.0
        %1123 = vmatpush1.msra.mxu0 0.0
        %1124 = vmatprep.subr.mxu0 0.0
        %1125 = vmatpush1.msra.mxu0 0.0
        %1126 = vmatprep.subr.mxu0 0.0
        %1127 = vmatpush1.msra.mxu0 0.0
        %1128 = vmatprep.subr.mxu0 0.0
        %1129 = vmatpush1.msra.mxu0 0.0
        %1130 = vmatprep.subr.mxu0 0.0
        %1131 = vmatpush1.msra.mxu0 0.0
        %1132 = vmatprep.subr.mxu0 0.0
        %1133 = vmatpush1.msra.mxu0 0.0
        %1134 = vmatprep.mubr.f32.mxu0 0.0
        %1135 = vmatmul.mubr.f32.gmra.mrb[0].mxu0 %v1038
        %v1136 = vpop.f32.mrb[0].mxu0
        %v1137 = vadd.f32 0.0, %v1136
        %v1138 = vpop.f32.mrb[0].mxu0
        %1139 = vmatprep.mubr.f32.mxu0 0.0
        %1140 = vmatmul.mubr.f32.gmra.mrb[0].mxu0 %v1041
        %v1141 = vpop.f32.mrb[0].mxu0
        %v1142 = vadd.f32 0.0, %v1141
        %v1143 = vpop.f32.mrb[0].mxu0
        %1144 = vmatprep.mubr.f32.mxu0 0.0
        %1145 = vmatmul.mubr.f32.gmra.mrb[0].mxu0 %v1044
        %v1146 = vpop.f32.mrb[0].mxu0
        %v1147 = vadd.f32 0.0, %v1146
        %v1148 = vpop.f32.mrb[0].mxu0
        %1149 = vmatprep.mubr.f32.mxu0 0.0
        %1150 = vmatmul.mubr.f32.gmra.mrb[0].mxu0 %v1047
        %v1151 = vpop.f32.mrb[0].mxu0
        %v1152 = vadd.f32 0.0, %v1151
        %v1153 = vpop.f32.mrb[0].mxu0
        %1154 = vmatprep.mubr.f32.mxu0 0.0
        %1155 = vmatmul.mubr.f32.gmra.mrb[0].mxu0 %v1050
        %v1156 = vpop.f32.mrb[0].mxu0
        %v1157 = vadd.f32 0.0, %v1156
        %v1158 = vpop.f32.mrb[0].mxu0
        %1159 = vmatprep.mubr.f32.mxu0 0.0
        %1160 = vmatmul.mubr.f32.gmra.mrb[0].mxu0 %v1053
        %v1161 = vpop.f32.mrb[0].mxu0
        %v1162 = vadd.f32 0.0, %v1161
        %v1163 = vpop.f32.mrb[0].mxu0
        %1164 = vmatprep.mubr.f32.mxu0 0.0
        %1165 = vmatmul.mubr.f32.gmra.mrb[0].mxu0 %v1056
        %v1166 = vpop.f32.mrb[0].mxu0
        %v1167 = vadd.f32 0.0, %v1166
        %v1168 = vpop.f32.mrb[0].mxu0
        %1169 = vmatprep.mubr.f32.mxu0 0.0
        %1170 = vmatmul.mubr.f32.gmra.mrb[0].mxu0 %v1059
        %v1171 = vpop.f32.mrb[0].mxu0
        %v1172 = vadd.f32 0.0, %v1171
        %v1173 = vpop.f32.mrb[0].mxu0
        %1174 = vmatprep.mubr.f32.mxu0 0.0
        %1175 = vmatmul.mubr.f32.gmra.mrb[0].mxu0 %v1062
        %v1176 = vpop.f32.mrb[0].mxu0
        %v1177 = vadd.f32 0.0, %v1176
        %v1178 = vpop.f32.mrb[0].mxu0
        %1179 = vmatprep.mubr.f32.mxu0 0.0
        %1180 = vmatmul.mubr.f32.gmra.mrb[0].mxu0 %v1065
        %v1181 = vpop.f32.mrb[0].mxu0
        %v1182 = vadd.f32 0.0, %v1181
        %v1183 = vpop.f32.mrb[0].mxu0
        %1184 = vdwg.mxu0
        %vm1185 = vcmp.gt.f32.partialorder %v1137, 0.0
        %vm1186 = vcmp.gt.f32.partialorder %v1142, 0.0
        %vm1187 = vcmp.gt.f32.partialorder %v1147, 0.0
        %v1188 = vmul.f32 %v1137, 1.442695
        %v1189 = vpow.pop %v1188
        %v1190 = vmul.f32 %v1142, 1.442695
        %v1191 = vpow.pop %v1190
        %v1192 = vmul.f32 %v1147, 1.442695
        %v1193 = vpow.pop %v1192
        %v1194 = vsub.f32 %v1189, 1.0
        %v1195 = vsub.f32 %v1191, 1.0
        %v1196 = vsub.f32 %v1193, 1.0
        %v1197 = vmul.f32 %v1194, 1.6732632
        %v1198 = vmul.f32 %v1195, 1.6732632
        %v1199 = vmul.f32 %v1196, 1.6732632
        %v1200 = vsel %vm1185, %v1137, %v1197
        %v1201 = vsel %vm1186, %v1142, %v1198
        %v1202 = vsel %vm1187, %v1147, %v1199
        %v1203 = vmul.f32 %v1200, 1.050701
        %v1204 = vmul.f32 %v1201, 1.050701
        %v1205 = vmul.f32 %v1202, 1.050701
        %vm1206 = vcmp.gt.f32.partialorder %v1152, 0.0
        %vm1207 = vcmp.gt.f32.partialorder %v1157, 0.0
        %v1208 = vmul.f32 %v1152, 1.442695
        %v1209 = vpow.pop %v1208
        %v1210 = vmul.f32 %v1157, 1.442695
        %v1211 = vpow.pop %v1210
        %v1212 = vsub.f32 %v1209, 1.0
        %v1213 = vsub.f32 %v1211, 1.0
        %v1214 = vmul.f32 %v1212, 1.6732632
        %v1215 = vmul.f32 %v1213, 1.6732632
        %v1216 = vsel %vm1206, %v1152, %v1214
        %v1217 = vsel %vm1207, %v1157, %v1215
        %v1218 = vmul.f32 %v1216, 1.050701
        %v1219 = vmul.f32 %v1217, 1.050701
        %v1223 = vrot.slane %v1205, 4
        %v1224 = vrot.slane %v1218, 4
        %v1225 = vsel %vm647, %v1223, %v1224
        %v1226 = vrot.slane %v1219, 4
        %v1227 = vsel %vm647, %v1224, %v1226
        %v1231 = vadd.f32 %v1203, %v1225
        %v1232 = vadd.f32 %v1204, %v1227
        %v1233 = vadd.f32 %v1205, %v1226
        %v1234 = vadd.f32 %v1231, %v1162
        %v1235 = vadd.f32 %v1232, %v1167
        %v1236 = vadd.f32 %v1233, %v1172
        %v1240 = vrot.slane %v1172, 4
        %v1241 = vrot.slane %v1177, 4
        %v1242 = vsel %vm647, %v1240, %v1241
        %v1243 = vrot.slane %v1182, 4
        %v1244 = vsel %vm647, %v1241, %v1243
        %v1248 = vadd.f32 %v1234, %v1242
        %v1249 = vadd.f32 %v1235, %v1244
        %v1250 = vadd.f32 %v1236, %v1243
        %vm1251 = vcmp.gt.f32.partialorder %v1248, 0.0
        %vm1252 = vcmp.gt.f32.partialorder %v1249, 0.0
        %vm1253 = vcmp.gt.f32.partialorder %v1250, 0.0
        %v1254 = vmul.f32 %v1248, 1.442695
        %v1255 = vpow.pop %v1254
        %v1256 = vmul.f32 %v1249, 1.442695
        %v1257 = vpow.pop %v1256
        %v1258 = vmul.f32 %v1250, 1.442695
        %v1259 = vpow.pop %v1258
        %v1260 = vsub.f32 %v1255, 1.0
        %v1261 = vsub.f32 %v1257, 1.0
        %v1262 = vsub.f32 %v1259, 1.0
        %v1263 = vmul.f32 %v1260, 1.6732632
        %v1264 = vmul.f32 %v1261, 1.6732632
        %v1265 = vmul.f32 %v1262, 1.6732632
        %v1266 = vsel %vm1251, %v1248, %v1263
        %v1267 = vsel %vm1252, %v1249, %v1264
        %v1268 = vsel %vm1253, %v1250, %v1265
        %v1269 = vmul.f32 %v1266, 1.050701
        %v1270 = vmul.f32 %v1267, 1.050701
        %v1271 = vmul.f32 %v1268, 1.050701
        %v1272 = vlaneseq
        %vm1273 = vcmp.ge.s32.totalorder %v1272, 0
        %vm1274 = vcmp.lt.s32.totalorder %v1272, 64
        %vm1275 = vmand %vm1273, %vm1274
        %1276 = vst.msk [vmem:[#allocation4] sm:$0x1] %vm1275, %v1269
        %v1279 = vunpack.c.l.s4 1966171168
        %v1280 = vunpack.c.0.s8 %v1279
        %v1281 = vlaneseq
        %v1282 = vshrl.u32 %v1281, 7
        %v1283 = vsub.s32 %v1280, %v1282
        %v1284 = vrot.slane %v1269, %v1283
        %v1285 = vcombine.high %v1284, %v1284
        %v1287 = vunpack.c.l.s4 1966171168
        %v1288 = vunpack.c.0.s8 %v1287
        %v1289 = vlaneseq
        %v1290 = vshrl.u32 %v1289, 7
        %v1291 = vsub.s32 %v1288, %v1290
        %v1292 = vrot.slane %v1284, %v1291
        %v1294 = vunpack.c.l.s4 1966171168
        %v1295 = vunpack.c.0.s8 %v1294
        %v1296 = vlaneseq
        %v1297 = vshrl.u32 %v1296, 7
        %v1298 = vsub.s32 %v1295, %v1297
        %v1299 = vrot.slane %v1285, %v1298
        %1300 = vrot.lane.b32.xlu0 %v1299, 64
        %v1301 = vpop.permute.xlu0 %1300
        %vm1303 = vcmp.ge.s32.totalorder %v1272, 64
        %vm1304 = vcmp.lt.s32.totalorder %v1272, 128
        %vm1305 = vmand %vm1303, %vm1304
        %1306 = vst.msk [vmem:[#allocation4] sm:$0x1] %vm1305, %v1301
        %v1307 = vcombine.high %v1292, %v1292
        %1309 = vst.msk [vmem:[#allocation4 + $0x1] sm:$0x1] %vm1275, %v1307
        %v1310 = vcombine.high %v1299, %v1299
        %1311 = vrot.lane.b32.xlu0 %v1310, 64
        %v1312 = vpop.permute.xlu0 %1311
        %1314 = vst.msk [vmem:[#allocation4 + $0x1] sm:$0x1] %vm1305, %v1312
        %v1315 = vcombine.high %v1269, %v1269
        %v1317 = vunpack.c.l.s4 1966171168
        %v1318 = vunpack.c.0.s8 %v1317
        %v1319 = vlaneseq
        %v1320 = vshrl.u32 %v1319, 7
        %v1321 = vsub.s32 %v1318, %v1320
        %v1322 = vrot.slane %v1315, %v1321
        %v1324 = vunpack.c.l.s4 1966171168
        %v1325 = vunpack.c.0.s8 %v1324
        %v1326 = vlaneseq
        %v1327 = vshrl.u32 %v1326, 7
        %v1328 = vsub.s32 %v1325, %v1327
        %v1329 = vrot.slane %v1322, %v1328
        %1331 = vst.msk [vmem:[#allocation4 + $0x2] sm:$0x1] %vm1275, %v1329
        %v1332 = vcombine.high %v1322, %v1322
        %v1334 = vunpack.c.l.s4 1966171168
        %v1335 = vunpack.c.0.s8 %v1334
        %v1336 = vlaneseq
        %v1337 = vshrl.u32 %v1336, 7
        %v1338 = vsub.s32 %v1335, %v1337
        %v1339 = vrot.slane %v1332, %v1338
        %1340 = vrot.lane.b32.xlu0 %v1339, 64
        %v1341 = vpop.permute.xlu0 %1340
        %1343 = vst.msk [vmem:[#allocation4 + $0x2] sm:$0x1] %vm1305, %v1341
        %v1344 = vcombine.high %v1329, %v1329
        %1346 = vst.msk [vmem:[#allocation4 + $0x3] sm:$0x1] %vm1275, %v1344
        %v1347 = vcombine.high %v1339, %v1339
        %1348 = vrot.lane.b32.xlu0 %v1347, 64
        %v1349 = vpop.permute.xlu0 %1348
        %1351 = vst.msk [vmem:[#allocation4 + $0x3] sm:$0x1] %vm1305, %v1349
        %1352 = vst.msk [vmem:[#allocation4 + $0x4] sm:$0x1] %vm1275, %v1270
        %v1355 = vunpack.c.l.s4 1966171168
        %v1356 = vunpack.c.0.s8 %v1355
        %v1357 = vlaneseq
        %v1358 = vshrl.u32 %v1357, 7
        %v1359 = vsub.s32 %v1356, %v1358
        %v1360 = vrot.slane %v1270, %v1359
        %v1361 = vcombine.high %v1360, %v1360
        %v1363 = vunpack.c.l.s4 1966171168
        %v1364 = vunpack.c.0.s8 %v1363
        %v1365 = vlaneseq
        %v1366 = vshrl.u32 %v1365, 7
        %v1367 = vsub.s32 %v1364, %v1366
        %v1368 = vrot.slane %v1360, %v1367
        %v1370 = vunpack.c.l.s4 1966171168
        %v1371 = vunpack.c.0.s8 %v1370
        %v1372 = vlaneseq
        %v1373 = vshrl.u32 %v1372, 7
        %v1374 = vsub.s32 %v1371, %v1373
        %v1375 = vrot.slane %v1361, %v1374
        %1376 = vrot.lane.b32.xlu0 %v1375, 64
        %v1377 = vpop.permute.xlu0 %1376
        %1379 = vst.msk [vmem:[#allocation4 + $0x4] sm:$0x1] %vm1305, %v1377
        %v1380 = vcombine.high %v1368, %v1368
        %1382 = vst.msk [vmem:[#allocation4 + $0x5] sm:$0x1] %vm1275, %v1380
        %v1383 = vcombine.high %v1375, %v1375
        %1384 = vrot.lane.b32.xlu0 %v1383, 64
        %v1385 = vpop.permute.xlu0 %1384
        %1387 = vst.msk [vmem:[#allocation4 + $0x5] sm:$0x1] %vm1305, %v1385
        %v1388 = vcombine.high %v1270, %v1270
        %v1390 = vunpack.c.l.s4 1966171168
        %v1391 = vunpack.c.0.s8 %v1390
        %v1392 = vlaneseq
        %v1393 = vshrl.u32 %v1392, 7
        %v1394 = vsub.s32 %v1391, %v1393
        %v1395 = vrot.slane %v1388, %v1394
        %v1397 = vunpack.c.l.s4 1966171168
        %v1398 = vunpack.c.0.s8 %v1397
        %v1399 = vlaneseq
        %v1400 = vshrl.u32 %v1399, 7
        %v1401 = vsub.s32 %v1398, %v1400
        %v1402 = vrot.slane %v1395, %v1401
        %1404 = vst.msk [vmem:[#allocation4 + $0x6] sm:$0x1] %vm1275, %v1402
        %v1405 = vcombine.high %v1395, %v1395
        %v1407 = vunpack.c.l.s4 1966171168
        %v1408 = vunpack.c.0.s8 %v1407
        %v1409 = vlaneseq
        %v1410 = vshrl.u32 %v1409, 7
        %v1411 = vsub.s32 %v1408, %v1410
        %v1412 = vrot.slane %v1405, %v1411
        %1413 = vrot.lane.b32.xlu0 %v1412, 64
        %v1414 = vpop.permute.xlu0 %1413
        %1416 = vst.msk [vmem:[#allocation4 + $0x6] sm:$0x1] %vm1305, %v1414
        %v1417 = vcombine.high %v1402, %v1402
        %1419 = vst.msk [vmem:[#allocation4 + $0x7] sm:$0x1] %vm1275, %v1417
        %v1420 = vcombine.high %v1412, %v1412
        %1421 = vrot.lane.b32.xlu0 %v1420, 64
        %v1422 = vpop.permute.xlu0 %1421
        %1424 = vst.msk [vmem:[#allocation4 + $0x7] sm:$0x1] %vm1305, %v1422
        %1425 = vst.msk [vmem:[#allocation4 + $0x8] sm:$0x1] %vm1275, %v1271
        %v1428 = vunpack.c.l.s4 1966171168
        %v1429 = vunpack.c.0.s8 %v1428
        %v1430 = vlaneseq
        %v1431 = vshrl.u32 %v1430, 7
        %v1432 = vsub.s32 %v1429, %v1431
        %v1433 = vrot.slane %v1271, %v1432
        %v1434 = vcombine.high %v1433, %v1433
        %v1436 = vunpack.c.l.s4 1966171168
        %v1437 = vunpack.c.0.s8 %v1436
        %v1438 = vlaneseq
        %v1439 = vshrl.u32 %v1438, 7
        %v1440 = vsub.s32 %v1437, %v1439
        %v1441 = vrot.slane %v1433, %v1440
        %v1443 = vunpack.c.l.s4 1966171168
        %v1444 = vunpack.c.0.s8 %v1443
        %v1445 = vlaneseq
        %v1446 = vshrl.u32 %v1445, 7
        %v1447 = vsub.s32 %v1444, %v1446
        %v1448 = vrot.slane %v1434, %v1447
        %1449 = vrot.lane.b32.xlu0 %v1448, 64
        %v1450 = vpop.permute.xlu0 %1449
        %1452 = vst.msk [vmem:[#allocation4 + $0x8] sm:$0x1] %vm1305, %v1450
        %v1453 = vcombine.high %v1441, %v1441
        %1455 = vst.msk [vmem:[#allocation4 + $0x9] sm:$0x1] %vm1275, %v1453
        %v1456 = vcombine.high %v1448, %v1448
        %1457 = vrot.lane.b32.xlu0 %v1456, 64
        %v1458 = vpop.permute.xlu0 %1457
        %1460 = vst.msk [vmem:[#allocation4 + $0x9] sm:$0x1] %vm1305, %v1458
        %v1461 = vld [vmem:[#allocation4] sm:$0xff]
        %v1462 = vld [vmem:[#allocation4 + $0x8] sm:$0x3]
        %v1463 = vld [vmem:[#allocation5] sm:$0xff]
        %v1464 = vld [vmem:[#allocation5 + $0x8] sm:$0xff]
        %v1465 = vld [vmem:[#allocation5 + $0x10] sm:$0xff]
        %v1466 = vld [vmem:[#allocation5 + $0x18] sm:$0xff]
        %v1467 = vld [vmem:[#allocation5 + $0x20] sm:$0xff]
        %v1468 = vld [vmem:[#allocation5 + $0x28] sm:$0xff]
        %v1469 = vld [vmem:[#allocation5 + $0x30] sm:$0xff]
        %v1470 = vld [vmem:[#allocation5 + $0x38] sm:$0xff]
        %v1471 = vld [vmem:[#allocation5 + $0x40] sm:$0xff]
        %v1472 = vld [vmem:[#allocation5 + $0x48] sm:$0xff]
        %v1473 = vld [vmem:[#allocation5 + $0x50] sm:$0xff]
        %v1474 = vld [vmem:[#allocation5 + $0x58] sm:$0xff]
        %v1475 = vld [vmem:[#allocation5 + $0x60] sm:$0xff]
        %v1476 = vld [vmem:[#allocation5 + $0x68] sm:$0xff]
        %v1477 = vld [vmem:[#allocation5 + $0x70] sm:$0xff]
        %v1478 = vld [vmem:[#allocation5 + $0x78] sm:$0xff]
        %v1479 = vld [vmem:[#allocation5 + $0x80] sm:$0xff]
        %v1480 = vld [vmem:[#allocation5 + $0x88] sm:$0xff]
        %v1481 = vld [vmem:[#allocation5 + $0x90] sm:$0xff]
        %v1482 = vld [vmem:[#allocation5 + $0x98] sm:$0xff]
        %v1483 = vld [vmem:[#allocation5 + $0xa0] sm:$0xff]
        %v1484 = vld [vmem:[#allocation5 + $0xa8] sm:$0xff]
        %v1485 = vld [vmem:[#allocation5 + $0xb0] sm:$0xff]
        %v1486 = vld [vmem:[#allocation5 + $0xb8] sm:$0xff]
        %v1487 = vld [vmem:[#allocation5 + $0xc0] sm:$0xff]
        %v1488 = vld [vmem:[#allocation5 + $0xc8] sm:$0xff]
        %v1489 = vld [vmem:[#allocation5 + $0xd0] sm:$0xff]
        %v1490 = vld [vmem:[#allocation5 + $0xd8] sm:$0xff]
        %v1491 = vld [vmem:[#allocation5 + $0xe0] sm:$0xff]
        %v1492 = vld [vmem:[#allocation5 + $0xe8] sm:$0xff]
        %v1493 = vld [vmem:[#allocation5 + $0xf0] sm:$0xff]
        %v1494 = vld [vmem:[#allocation5 + $0xf8] sm:$0xff]
        %v1495 = vld [vmem:[#allocation5 + $0x100] sm:$0xff]
        %v1496 = vld [vmem:[#allocation5 + $0x108] sm:$0xff]
        %v1497 = vld [vmem:[#allocation5 + $0x110] sm:$0xff]
        %v1498 = vld [vmem:[#allocation5 + $0x118] sm:$0xff]
        %v1499 = vld [vmem:[#allocation5 + $0x120] sm:$0xff]
        %v1500 = vld [vmem:[#allocation5 + $0x128] sm:$0xff]
        %v1501 = vld [vmem:[#allocation5 + $0x130] sm:$0xff]
        %v1502 = vld [vmem:[#allocation5 + $0x138] sm:$0xff]
        %v1503 = vld [vmem:[#allocation5 + $0x140] sm:$0xff]
        %v1504 = vld [vmem:[#allocation5 + $0x148] sm:$0xff]
        %v1505 = vld [vmem:[#allocation5 + $0x150] sm:$0xff]
        %v1506 = vld [vmem:[#allocation5 + $0x158] sm:$0xff]
        %v1507 = vld [vmem:[#allocation5 + $0x160] sm:$0xff]
        %v1508 = vld [vmem:[#allocation5 + $0x168] sm:$0xff]
        %v1509 = vld [vmem:[#allocation5 + $0x170] sm:$0xff]
        %v1510 = vld [vmem:[#allocation5 + $0x178] sm:$0xff]
        %v1511 = vld [vmem:[#allocation5 + $0x180] sm:$0xff]
        %v1512 = vld [vmem:[#allocation5 + $0x188] sm:$0xff]
        %v1513 = vld [vmem:[#allocation5 + $0x190] sm:$0xff]
        %v1514 = vld [vmem:[#allocation5 + $0x198] sm:$0xff]
        %v1515 = vld [vmem:[#allocation5 + $0x1a0] sm:$0xff]
        %v1516 = vld [vmem:[#allocation5 + $0x1a8] sm:$0xff]
        %v1517 = vld [vmem:[#allocation5 + $0x1b0] sm:$0xff]
        %v1518 = vld [vmem:[#allocation5 + $0x1b8] sm:$0xff]
        %v1519 = vld [vmem:[#allocation5 + $0x1c0] sm:$0xff]
        %v1520 = vld [vmem:[#allocation5 + $0x1c8] sm:$0xff]
        %v1521 = vld [vmem:[#allocation5 + $0x1d0] sm:$0xff]
        %v1522 = vld [vmem:[#allocation5 + $0x1d8] sm:$0xff]
        %v1523 = vld [vmem:[#allocation5 + $0x1e0] sm:$0xff]
        %v1524 = vld [vmem:[#allocation5 + $0x1e8] sm:$0xff]
        %v1525 = vld [vmem:[#allocation5 + $0x1f0] sm:$0xff]
        %v1526 = vld [vmem:[#allocation5 + $0x1f8] sm:$0xff]
        %v1527 = vld [vmem:[#allocation5 + $0x200] sm:$0xff]
        %v1528 = vld [vmem:[#allocation5 + $0x208] sm:$0xff]
        %v1529 = vld [vmem:[#allocation5 + $0x210] sm:$0xff]
        %v1530 = vld [vmem:[#allocation5 + $0x218] sm:$0xff]
        %v1531 = vld [vmem:[#allocation5 + $0x220] sm:$0xff]
        %v1532 = vld [vmem:[#allocation5 + $0x228] sm:$0xff]
        %v1533 = vld [vmem:[#allocation5 + $0x230] sm:$0xff]
        %v1534 = vld [vmem:[#allocation5 + $0x238] sm:$0xff]
        %v1535 = vld [vmem:[#allocation5 + $0x240] sm:$0xff]
        %v1536 = vld [vmem:[#allocation5 + $0x248] sm:$0xff]
        %v1537 = vld [vmem:[#allocation5 + $0x250] sm:$0xff]
        %v1538 = vld [vmem:[#allocation5 + $0x258] sm:$0xff]
        %v1539 = vld [vmem:[#allocation5 + $0x260] sm:$0xff]
        %v1540 = vld [vmem:[#allocation5 + $0x268] sm:$0xff]
        %v1541 = vld [vmem:[#allocation5 + $0x270] sm:$0xff]
        %v1542 = vld [vmem:[#allocation5 + $0x278] sm:$0xff]
        %v1543 = vld [vmem:[#allocation5 + $0x280] sm:$0xff]
        %v1544 = vld [vmem:[#allocation5 + $0x288] sm:$0xff]
        %v1545 = vld [vmem:[#allocation5 + $0x290] sm:$0xff]
        %v1546 = vld [vmem:[#allocation5 + $0x298] sm:$0xff]
        %v1547 = vld [vmem:[#allocation5 + $0x2a0] sm:$0xff]
        %v1548 = vld [vmem:[#allocation5 + $0x2a8] sm:$0xff]
        %v1549 = vld [vmem:[#allocation5 + $0x2b0] sm:$0xff]
        %v1550 = vld [vmem:[#allocation5 + $0x2b8] sm:$0xff]
        %v1551 = vld [vmem:[#allocation5 + $0x2c0] sm:$0xff]
        %v1552 = vld [vmem:[#allocation5 + $0x2c8] sm:$0xff]
        %v1553 = vld [vmem:[#allocation5 + $0x2d0] sm:$0xff]
        %v1554 = vld [vmem:[#allocation5 + $0x2d8] sm:$0xff]
        %v1555 = vld [vmem:[#allocation5 + $0x2e0] sm:$0xff]
        %v1556 = vld [vmem:[#allocation5 + $0x2e8] sm:$0xff]
        %v1557 = vld [vmem:[#allocation5 + $0x2f0] sm:$0xff]
        %v1558 = vld [vmem:[#allocation5 + $0x2f8] sm:$0xff]
        %v1559 = vld [vmem:[#allocation5 + $0x300] sm:$0xff]
        %v1560 = vld [vmem:[#allocation5 + $0x308] sm:$0xff]
        %v1561 = vld [vmem:[#allocation5 + $0x310] sm:$0xff]
        %v1562 = vld [vmem:[#allocation5 + $0x318] sm:$0xff]
        %v1563 = vld [vmem:[#allocation5 + $0x320] sm:$0xff]
        %v1564 = vld [vmem:[#allocation5 + $0x328] sm:$0xff]
        %v1565 = vld [vmem:[#allocation5 + $0x330] sm:$0xff]
        %v1566 = vld [vmem:[#allocation5 + $0x338] sm:$0xff]
        %v1567 = vld [vmem:[#allocation5 + $0x340] sm:$0xff]
        %v1568 = vld [vmem:[#allocation5 + $0x348] sm:$0xff]
        %v1569 = vld [vmem:[#allocation5 + $0x350] sm:$0xff]
        %v1570 = vld [vmem:[#allocation5 + $0x358] sm:$0xff]
        %v1571 = vld [vmem:[#allocation5 + $0x360] sm:$0xff]
        %v1572 = vld [vmem:[#allocation5 + $0x368] sm:$0xff]
        %v1573 = vld [vmem:[#allocation5 + $0x370] sm:$0xff]
        %v1574 = vld [vmem:[#allocation5 + $0x378] sm:$0xff]
        %v1575 = vld [vmem:[#allocation5 + $0x380] sm:$0xff]
        %v1576 = vld [vmem:[#allocation5 + $0x388] sm:$0xff]
        %v1577 = vld [vmem:[#allocation5 + $0x390] sm:$0xff]
        %v1578 = vld [vmem:[#allocation5 + $0x398] sm:$0xff]
        %v1579 = vld [vmem:[#allocation5 + $0x3a0] sm:$0xff]
        %v1580 = vld [vmem:[#allocation5 + $0x3a8] sm:$0xff]
        %v1581 = vld [vmem:[#allocation5 + $0x3b0] sm:$0xff]
        %v1582 = vld [vmem:[#allocation5 + $0x3b8] sm:$0xff]
        %v1583 = vld [vmem:[#allocation5 + $0x3c0] sm:$0xff]
        %v1584 = vld [vmem:[#allocation5 + $0x3c8] sm:$0xff]
        %v1585 = vld [vmem:[#allocation5 + $0x3d0] sm:$0xff]
        %v1586 = vld [vmem:[#allocation5 + $0x3d8] sm:$0xff]
        %v1587 = vld [vmem:[#allocation5 + $0x3e0] sm:$0xff]
        %v1588 = vld [vmem:[#allocation5 + $0x3e8] sm:$0xff]
        %v1589 = vld [vmem:[#allocation5 + $0x3f0] sm:$0xff]
        %v1590 = vld [vmem:[#allocation5 + $0x3f8] sm:$0xff]
        %v1591 = vld [vmem:[#allocation5 + $0x400] sm:$0xff]
        %v1592 = vld [vmem:[#allocation5 + $0x408] sm:$0xff]
        %v1593 = vld [vmem:[#allocation5 + $0x410] sm:$0xff]
        %v1594 = vld [vmem:[#allocation5 + $0x418] sm:$0xff]
        %v1595 = vld [vmem:[#allocation5 + $0x420] sm:$0xff]
        %v1596 = vld [vmem:[#allocation5 + $0x428] sm:$0xff]
        %v1597 = vld [vmem:[#allocation5 + $0x430] sm:$0xff]
        %v1598 = vld [vmem:[#allocation5 + $0x438] sm:$0xff]
        %v1599 = vld [vmem:[#allocation5 + $0x440] sm:$0xff]
        %v1600 = vld [vmem:[#allocation5 + $0x448] sm:$0xff]
        %v1601 = vld [vmem:[#allocation5 + $0x450] sm:$0xff]
        %v1602 = vld [vmem:[#allocation5 + $0x458] sm:$0xff]
        %v1603 = vld [vmem:[#allocation5 + $0x460] sm:$0xff]
        %v1604 = vld [vmem:[#allocation5 + $0x468] sm:$0xff]
        %v1605 = vld [vmem:[#allocation5 + $0x470] sm:$0xff]
        %v1606 = vld [vmem:[#allocation5 + $0x478] sm:$0xff]
        %v1607 = vld [vmem:[#allocation5 + $0x480] sm:$0xff]
        %v1608 = vld [vmem:[#allocation5 + $0x488] sm:$0xff]
        %v1609 = vld [vmem:[#allocation5 + $0x490] sm:$0xff]
        %v1610 = vld [vmem:[#allocation5 + $0x498] sm:$0xff]
        %v1611 = vld [vmem:[#allocation5 + $0x4a0] sm:$0xff]
        %v1612 = vld [vmem:[#allocation5 + $0x4a8] sm:$0xff]
        %v1613 = vld [vmem:[#allocation5 + $0x4b0] sm:$0xff]
        %v1614 = vld [vmem:[#allocation5 + $0x4b8] sm:$0xff]
        %v1615 = vld [vmem:[#allocation5 + $0x4c0] sm:$0xff]
        %v1616 = vld [vmem:[#allocation5 + $0x4c8] sm:$0xff]
        %v1617 = vld [vmem:[#allocation5 + $0x4d0] sm:$0xff]
        %v1618 = vld [vmem:[#allocation5 + $0x4d8] sm:$0xff]
        %v1619 = vld [vmem:[#allocation5 + $0x4e0] sm:$0xff]
        %v1620 = vld [vmem:[#allocation5 + $0x4e8] sm:$0xff]
        %v1621 = vld [vmem:[#allocation5 + $0x4f0] sm:$0xff]
        %v1622 = vld [vmem:[#allocation5 + $0x4f8] sm:$0xff]
        %v1623 = vld [vmem:[%s5] sm:$0x1]
        %v1626 = vlaneseq
        %v1627 = vshrl.u32 %v1626, 7
        %v1628 = vsub.s32 0, %v1627
        %v1629 = vrot.slane %v1461, %v1628
        %v1630 = vlaneseq
        %v1631 = vshrl.u32 %v1630, 7
        %v1632 = vsub.s32 1, %v1631
        %v1633 = vrot.slane %v1461, %v1632
        %v1634 = vlaneseq
        %v1635 = vshrl.u32 %v1634, 7
        %v1636 = vsub.s32 2, %v1635
        %v1637 = vrot.slane %v1461, %v1636
        %v1638 = vlaneseq
        %v1639 = vshrl.u32 %v1638, 7
        %v1640 = vsub.s32 3, %v1639
        %v1641 = vrot.slane %v1461, %v1640
        %v1642 = vlaneseq
        %v1643 = vshrl.u32 %v1642, 7
        %v1644 = vsub.s32 4, %v1643
        %v1645 = vrot.slane %v1461, %v1644
        %v1646 = vlaneseq
        %v1647 = vshrl.u32 %v1646, 7
        %v1648 = vsub.s32 5, %v1647
        %v1649 = vrot.slane %v1461, %v1648
        %v1650 = vlaneseq
        %v1651 = vshrl.u32 %v1650, 7
        %v1652 = vsub.s32 6, %v1651
        %v1653 = vrot.slane %v1461, %v1652
        %v1654 = vlaneseq
        %v1655 = vshrl.u32 %v1654, 7
        %v1656 = vsub.s32 7, %v1655
        %v1657 = vrot.slane %v1461, %v1656
        %v1658 = vlaneseq
        %v1659 = vshrl.u32 %v1658, 7
        %v1660 = vsub.s32 0, %v1659
        %v1661 = vrot.slane %v1462, %v1660
        %v1662 = vlaneseq
        %v1663 = vshrl.u32 %v1662, 7
        %v1664 = vsub.s32 1, %v1663
        %v1665 = vrot.slane %v1462, %v1664
        %1676 = vmatprep.subr.mxu0 0.0
        %1677 = vmatpush1.msra.mxu0 %v1463
        %1678 = vmatprep.subr.mxu0 0.0
        %1679 = vmatpush1.msra.mxu0 %v1464
        %1680 = vmatprep.subr.mxu0 0.0
        %1681 = vmatpush1.msra.mxu0 %v1465
        %1682 = vmatprep.subr.mxu0 0.0
        %1683 = vmatpush1.msra.mxu0 %v1466
        %1684 = vmatprep.subr.mxu0 0.0
        %1685 = vmatpush1.msra.mxu0 %v1467
        %1686 = vmatprep.subr.mxu0 0.0
        %1687 = vmatpush1.msra.mxu0 %v1468
        %1688 = vmatprep.subr.mxu0 0.0
        %1689 = vmatpush1.msra.mxu0 %v1469
        %1690 = vmatprep.subr.mxu0 0.0
        %1691 = vmatpush1.msra.mxu0 %v1470
        %1692 = vmatprep.subr.mxu0 0.0
        %1693 = vmatpush1.msra.mxu0 %v1471
        %1694 = vmatprep.subr.mxu0 0.0
        %1695 = vmatpush1.msra.mxu0 %v1472
        %1696 = vmatprep.subr.mxu0 0.0
        %1697 = vmatpush1.msra.mxu0 %v1473
        %1698 = vmatprep.subr.mxu0 0.0
        %1699 = vmatpush1.msra.mxu0 %v1474
        %1700 = vmatprep.subr.mxu0 0.0
        %1701 = vmatpush1.msra.mxu0 %v1475
        %1702 = vmatprep.subr.mxu0 0.0
        %1703 = vmatpush1.msra.mxu0 %v1476
        %1704 = vmatprep.subr.mxu0 0.0
        %1705 = vmatpush1.msra.mxu0 %v1477
        %1706 = vmatprep.subr.mxu0 0.0
        %1707 = vmatpush1.msra.mxu0 %v1478
        %1708 = vmatprep.subr.mxu0 0.0
        %1709 = vmatpush1.msra.mxu0 %v1479
        %1710 = vmatprep.subr.mxu0 0.0
        %1711 = vmatpush1.msra.mxu0 %v1480
        %1712 = vmatprep.subr.mxu0 0.0
        %1713 = vmatpush1.msra.mxu0 %v1481
        %1714 = vmatprep.subr.mxu0 0.0
        %1715 = vmatpush1.msra.mxu0 %v1482
        %1716 = vmatprep.subr.mxu0 0.0
        %1717 = vmatpush1.msra.mxu0 %v1483
        %1718 = vmatprep.subr.mxu0 0.0
        %1719 = vmatpush1.msra.mxu0 %v1484
        %1720 = vmatprep.subr.mxu0 0.0
        %1721 = vmatpush1.msra.mxu0 %v1485
        %1722 = vmatprep.subr.mxu0 0.0
        %1723 = vmatpush1.msra.mxu0 %v1486
        %1724 = vmatprep.subr.mxu0 0.0
        %1725 = vmatpush1.msra.mxu0 %v1487
        %1726 = vmatprep.subr.mxu0 0.0
        %1727 = vmatpush1.msra.mxu0 %v1488
        %1728 = vmatprep.subr.mxu0 0.0
        %1729 = vmatpush1.msra.mxu0 %v1489
        %1730 = vmatprep.subr.mxu0 0.0
        %1731 = vmatpush1.msra.mxu0 %v1490
        %1732 = vmatprep.subr.mxu0 0.0
        %1733 = vmatpush1.msra.mxu0 %v1491
        %1734 = vmatprep.subr.mxu0 0.0
        %1735 = vmatpush1.msra.mxu0 %v1492
        %1736 = vmatprep.subr.mxu0 0.0
        %1737 = vmatpush1.msra.mxu0 %v1493
        %1738 = vmatprep.subr.mxu0 0.0
        %1739 = vmatpush1.msra.mxu0 %v1494
        %1740 = vmatprep.mubr.f32.mxu0 %v1633
        %1741 = vmatmul.mubr.f32.gmra.mrb[0].mxu0 %v1629
        %v1742 = vpop.f32.mrb[0].mxu0
        %v1743 = vadd.f32 %v1623, %v1742
        %v1744 = vpop.f32.mrb[0].mxu0
        %1745 = vdwg.mxu0
        %1746 = vmatprep.subr.mxu0 0.0
        %1747 = vmatpush1.msra.mxu0 %v1495
        %1748 = vmatprep.subr.mxu0 0.0
        %1749 = vmatpush1.msra.mxu0 %v1496
        %1750 = vmatprep.subr.mxu0 0.0
        %1751 = vmatpush1.msra.mxu0 %v1497
        %1752 = vmatprep.subr.mxu0 0.0
        %1753 = vmatpush1.msra.mxu0 %v1498
        %1754 = vmatprep.subr.mxu0 0.0
        %1755 = vmatpush1.msra.mxu0 %v1499
        %1756 = vmatprep.subr.mxu0 0.0
        %1757 = vmatpush1.msra.mxu0 %v1500
        %1758 = vmatprep.subr.mxu0 0.0
        %1759 = vmatpush1.msra.mxu0 %v1501
        %1760 = vmatprep.subr.mxu0 0.0
        %1761 = vmatpush1.msra.mxu0 %v1502
        %1762 = vmatprep.subr.mxu0 0.0
        %1763 = vmatpush1.msra.mxu0 %v1503
        %1764 = vmatprep.subr.mxu0 0.0
        %1765 = vmatpush1.msra.mxu0 %v1504
        %1766 = vmatprep.subr.mxu0 0.0
        %1767 = vmatpush1.msra.mxu0 %v1505
        %1768 = vmatprep.subr.mxu0 0.0
        %1769 = vmatpush1.msra.mxu0 %v1506
        %1770 = vmatprep.subr.mxu0 0.0
        %1771 = vmatpush1.msra.mxu0 %v1507
        %1772 = vmatprep.subr.mxu0 0.0
        %1773 = vmatpush1.msra.mxu0 %v1508
        %1774 = vmatprep.subr.mxu0 0.0
        %1775 = vmatpush1.msra.mxu0 %v1509
        %1776 = vmatprep.subr.mxu0 0.0
        %1777 = vmatpush1.msra.mxu0 %v1510
        %1778 = vmatprep.subr.mxu0 0.0
        %1779 = vmatpush1.msra.mxu0 %v1511
        %1780 = vmatprep.subr.mxu0 0.0
        %1781 = vmatpush1.msra.mxu0 %v1512
        %1782 = vmatprep.subr.mxu0 0.0
        %1783 = vmatpush1.msra.mxu0 %v1513
        %1784 = vmatprep.subr.mxu0 0.0
        %1785 = vmatpush1.msra.mxu0 %v1514
        %1786 = vmatprep.subr.mxu0 0.0
        %1787 = vmatpush1.msra.mxu0 %v1515
        %1788 = vmatprep.subr.mxu0 0.0
        %1789 = vmatpush1.msra.mxu0 %v1516
        %1790 = vmatprep.subr.mxu0 0.0
        %1791 = vmatpush1.msra.mxu0 %v1517
        %1792 = vmatprep.subr.mxu0 0.0
        %1793 = vmatpush1.msra.mxu0 %v1518
        %1794 = vmatprep.subr.mxu0 0.0
        %1795 = vmatpush1.msra.mxu0 %v1519
        %1796 = vmatprep.subr.mxu0 0.0
        %1797 = vmatpush1.msra.mxu0 %v1520
        %1798 = vmatprep.subr.mxu0 0.0
        %1799 = vmatpush1.msra.mxu0 %v1521
        %1800 = vmatprep.subr.mxu0 0.0
        %1801 = vmatpush1.msra.mxu0 %v1522
        %1802 = vmatprep.subr.mxu0 0.0
        %1803 = vmatpush1.msra.mxu0 %v1523
        %1804 = vmatprep.subr.mxu0 0.0
        %1805 = vmatpush1.msra.mxu0 %v1524
        %1806 = vmatprep.subr.mxu0 0.0
        %1807 = vmatpush1.msra.mxu0 %v1525
        %1808 = vmatprep.subr.mxu0 0.0
        %1809 = vmatpush1.msra.mxu0 %v1526
        %1810 = vmatprep.mubr.f32.mxu0 %v1641
        %1811 = vmatmul.mubr.f32.gmra.mrb[0].mxu0 %v1637
        %v1812 = vpop.f32.mrb[0].mxu0
        %v1813 = vadd.f32 %v1743, %v1812
        %v1814 = vpop.f32.mrb[0].mxu0
        %1815 = vdwg.mxu0
        %1816 = vmatprep.subr.mxu0 0.0
        %1817 = vmatpush1.msra.mxu0 %v1527
        %1818 = vmatprep.subr.mxu0 0.0
        %1819 = vmatpush1.msra.mxu0 %v1528
        %1820 = vmatprep.subr.mxu0 0.0
        %1821 = vmatpush1.msra.mxu0 %v1529
        %1822 = vmatprep.subr.mxu0 0.0
        %1823 = vmatpush1.msra.mxu0 %v1530
        %1824 = vmatprep.subr.mxu0 0.0
        %1825 = vmatpush1.msra.mxu0 %v1531
        %1826 = vmatprep.subr.mxu0 0.0
        %1827 = vmatpush1.msra.mxu0 %v1532
        %1828 = vmatprep.subr.mxu0 0.0
        %1829 = vmatpush1.msra.mxu0 %v1533
        %1830 = vmatprep.subr.mxu0 0.0
        %1831 = vmatpush1.msra.mxu0 %v1534
        %1832 = vmatprep.subr.mxu0 0.0
        %1833 = vmatpush1.msra.mxu0 %v1535
        %1834 = vmatprep.subr.mxu0 0.0
        %1835 = vmatpush1.msra.mxu0 %v1536
        %1836 = vmatprep.subr.mxu0 0.0
        %1837 = vmatpush1.msra.mxu0 %v1537
        %1838 = vmatprep.subr.mxu0 0.0
        %1839 = vmatpush1.msra.mxu0 %v1538
        %1840 = vmatprep.subr.mxu0 0.0
        %1841 = vmatpush1.msra.mxu0 %v1539
        %1842 = vmatprep.subr.mxu0 0.0
        %1843 = vmatpush1.msra.mxu0 %v1540
        %1844 = vmatprep.subr.mxu0 0.0
        %1845 = vmatpush1.msra.mxu0 %v1541
        %1846 = vmatprep.subr.mxu0 0.0
        %1847 = vmatpush1.msra.mxu0 %v1542
        %1848 = vmatprep.subr.mxu0 0.0
        %1849 = vmatpush1.msra.mxu0 %v1543
        %1850 = vmatprep.subr.mxu0 0.0
        %1851 = vmatpush1.msra.mxu0 %v1544
        %1852 = vmatprep.subr.mxu0 0.0
        %1853 = vmatpush1.msra.mxu0 %v1545
        %1854 = vmatprep.subr.mxu0 0.0
        %1855 = vmatpush1.msra.mxu0 %v1546
        %1856 = vmatprep.subr.mxu0 0.0
        %1857 = vmatpush1.msra.mxu0 %v1547
        %1858 = vmatprep.subr.mxu0 0.0
        %1859 = vmatpush1.msra.mxu0 %v1548
        %1860 = vmatprep.subr.mxu0 0.0
        %1861 = vmatpush1.msra.mxu0 %v1549
        %1862 = vmatprep.subr.mxu0 0.0
        %1863 = vmatpush1.msra.mxu0 %v1550
        %1864 = vmatprep.subr.mxu0 0.0
        %1865 = vmatpush1.msra.mxu0 %v1551
        %1866 = vmatprep.subr.mxu0 0.0
        %1867 = vmatpush1.msra.mxu0 %v1552
        %1868 = vmatprep.subr.mxu0 0.0
        %1869 = vmatpush1.msra.mxu0 %v1553
        %1870 = vmatprep.subr.mxu0 0.0
        %1871 = vmatpush1.msra.mxu0 %v1554
        %1872 = vmatprep.subr.mxu0 0.0
        %1873 = vmatpush1.msra.mxu0 %v1555
        %1874 = vmatprep.subr.mxu0 0.0
        %1875 = vmatpush1.msra.mxu0 %v1556
        %1876 = vmatprep.subr.mxu0 0.0
        %1877 = vmatpush1.msra.mxu0 %v1557
        %1878 = vmatprep.subr.mxu0 0.0
        %1879 = vmatpush1.msra.mxu0 %v1558
        %1880 = vmatprep.mubr.f32.mxu0 %v1649
        %1881 = vmatmul.mubr.f32.gmra.mrb[0].mxu0 %v1645
        %v1882 = vpop.f32.mrb[0].mxu0
        %v1883 = vadd.f32 %v1813, %v1882
        %v1884 = vpop.f32.mrb[0].mxu0
        %1885 = vdwg.mxu0
        %1886 = vmatprep.subr.mxu0 0.0
        %1887 = vmatpush1.msra.mxu0 %v1559
        %1888 = vmatprep.subr.mxu0 0.0
        %1889 = vmatpush1.msra.mxu0 %v1560
        %1890 = vmatprep.subr.mxu0 0.0
        %1891 = vmatpush1.msra.mxu0 %v1561
        %1892 = vmatprep.subr.mxu0 0.0
        %1893 = vmatpush1.msra.mxu0 %v1562
        %1894 = vmatprep.subr.mxu0 0.0
        %1895 = vmatpush1.msra.mxu0 %v1563
        %1896 = vmatprep.subr.mxu0 0.0
        %1897 = vmatpush1.msra.mxu0 %v1564
        %1898 = vmatprep.subr.mxu0 0.0
        %1899 = vmatpush1.msra.mxu0 %v1565
        %1900 = vmatprep.subr.mxu0 0.0
        %1901 = vmatpush1.msra.mxu0 %v1566
        %1902 = vmatprep.subr.mxu0 0.0
        %1903 = vmatpush1.msra.mxu0 %v1567
        %1904 = vmatprep.subr.mxu0 0.0
        %1905 = vmatpush1.msra.mxu0 %v1568
        %1906 = vmatprep.subr.mxu0 0.0
        %1907 = vmatpush1.msra.mxu0 %v1569
        %1908 = vmatprep.subr.mxu0 0.0
        %1909 = vmatpush1.msra.mxu0 %v1570
        %1910 = vmatprep.subr.mxu0 0.0
        %1911 = vmatpush1.msra.mxu0 %v1571
        %1912 = vmatprep.subr.mxu0 0.0
        %1913 = vmatpush1.msra.mxu0 %v1572
        %1914 = vmatprep.subr.mxu0 0.0
        %1915 = vmatpush1.msra.mxu0 %v1573
        %1916 = vmatprep.subr.mxu0 0.0
        %1917 = vmatpush1.msra.mxu0 %v1574
        %1918 = vmatprep.subr.mxu0 0.0
        %1919 = vmatpush1.msra.mxu0 %v1575
        %1920 = vmatprep.subr.mxu0 0.0
        %1921 = vmatpush1.msra.mxu0 %v1576
        %1922 = vmatprep.subr.mxu0 0.0
        %1923 = vmatpush1.msra.mxu0 %v1577
        %1924 = vmatprep.subr.mxu0 0.0
        %1925 = vmatpush1.msra.mxu0 %v1578
        %1926 = vmatprep.subr.mxu0 0.0
        %1927 = vmatpush1.msra.mxu0 %v1579
        %1928 = vmatprep.subr.mxu0 0.0
        %1929 = vmatpush1.msra.mxu0 %v1580
        %1930 = vmatprep.subr.mxu0 0.0
        %1931 = vmatpush1.msra.mxu0 %v1581
        %1932 = vmatprep.subr.mxu0 0.0
        %1933 = vmatpush1.msra.mxu0 %v1582
        %1934 = vmatprep.subr.mxu0 0.0
        %1935 = vmatpush1.msra.mxu0 %v1583
        %1936 = vmatprep.subr.mxu0 0.0
        %1937 = vmatpush1.msra.mxu0 %v1584
        %1938 = vmatprep.subr.mxu0 0.0
        %1939 = vmatpush1.msra.mxu0 %v1585
        %1940 = vmatprep.subr.mxu0 0.0
        %1941 = vmatpush1.msra.mxu0 %v1586
        %1942 = vmatprep.subr.mxu0 0.0
        %1943 = vmatpush1.msra.mxu0 %v1587
        %1944 = vmatprep.subr.mxu0 0.0
        %1945 = vmatpush1.msra.mxu0 %v1588
        %1946 = vmatprep.subr.mxu0 0.0
        %1947 = vmatpush1.msra.mxu0 %v1589
        %1948 = vmatprep.subr.mxu0 0.0
        %1949 = vmatpush1.msra.mxu0 %v1590
        %1950 = vmatprep.mubr.f32.mxu0 %v1657
        %1951 = vmatmul.mubr.f32.gmra.mrb[0].mxu0 %v1653
        %v1952 = vpop.f32.mrb[0].mxu0
        %v1953 = vadd.f32 %v1883, %v1952
        %v1954 = vpop.f32.mrb[0].mxu0
        %1955 = vdwg.mxu0
        %1956 = vmatprep.subr.mxu0 0.0
        %1957 = vmatpush1.msra.mxu0 %v1591
        %1958 = vmatprep.subr.mxu0 0.0
        %1959 = vmatpush1.msra.mxu0 %v1592
        %1960 = vmatprep.subr.mxu0 0.0
        %1961 = vmatpush1.msra.mxu0 %v1593
        %1962 = vmatprep.subr.mxu0 0.0
        %1963 = vmatpush1.msra.mxu0 %v1594
        %1964 = vmatprep.subr.mxu0 0.0
        %1965 = vmatpush1.msra.mxu0 %v1595
        %1966 = vmatprep.subr.mxu0 0.0
        %1967 = vmatpush1.msra.mxu0 %v1596
        %1968 = vmatprep.subr.mxu0 0.0
        %1969 = vmatpush1.msra.mxu0 %v1597
        %1970 = vmatprep.subr.mxu0 0.0
        %1971 = vmatpush1.msra.mxu0 %v1598
        %1972 = vmatprep.subr.mxu0 0.0
        %1973 = vmatpush1.msra.mxu0 %v1599
        %1974 = vmatprep.subr.mxu0 0.0
        %1975 = vmatpush1.msra.mxu0 %v1600
        %1976 = vmatprep.subr.mxu0 0.0
        %1977 = vmatpush1.msra.mxu0 %v1601
        %1978 = vmatprep.subr.mxu0 0.0
        %1979 = vmatpush1.msra.mxu0 %v1602
        %1980 = vmatprep.subr.mxu0 0.0
        %1981 = vmatpush1.msra.mxu0 %v1603
        %1982 = vmatprep.subr.mxu0 0.0
        %1983 = vmatpush1.msra.mxu0 %v1604
        %1984 = vmatprep.subr.mxu0 0.0
        %1985 = vmatpush1.msra.mxu0 %v1605
        %1986 = vmatprep.subr.mxu0 0.0
        %1987 = vmatpush1.msra.mxu0 %v1606
        %1988 = vmatprep.subr.mxu0 0.0
        %1989 = vmatpush1.msra.mxu0 %v1607
        %1990 = vmatprep.subr.mxu0 0.0
        %1991 = vmatpush1.msra.mxu0 %v1608
        %1992 = vmatprep.subr.mxu0 0.0
        %1993 = vmatpush1.msra.mxu0 %v1609
        %1994 = vmatprep.subr.mxu0 0.0
        %1995 = vmatpush1.msra.mxu0 %v1610
        %1996 = vmatprep.subr.mxu0 0.0
        %1997 = vmatpush1.msra.mxu0 %v1611
        %1998 = vmatprep.subr.mxu0 0.0
        %1999 = vmatpush1.msra.mxu0 %v1612
        %2000 = vmatprep.subr.mxu0 0.0
        %2001 = vmatpush1.msra.mxu0 %v1613
        %2002 = vmatprep.subr.mxu0 0.0
        %2003 = vmatpush1.msra.mxu0 %v1614
        %2004 = vmatprep.subr.mxu0 0.0
        %2005 = vmatpush1.msra.mxu0 %v1615
        %2006 = vmatprep.subr.mxu0 0.0
        %2007 = vmatpush1.msra.mxu0 %v1616
        %2008 = vmatprep.subr.mxu0 0.0
        %2009 = vmatpush1.msra.mxu0 %v1617
        %2010 = vmatprep.subr.mxu0 0.0
        %2011 = vmatpush1.msra.mxu0 %v1618
        %2012 = vmatprep.subr.mxu0 0.0
        %2013 = vmatpush1.msra.mxu0 %v1619
        %2014 = vmatprep.subr.mxu0 0.0
        %2015 = vmatpush1.msra.mxu0 %v1620
        %2016 = vmatprep.subr.mxu0 0.0
        %2017 = vmatpush1.msra.mxu0 %v1621
        %2018 = vmatprep.subr.mxu0 0.0
        %2019 = vmatpush1.msra.mxu0 %v1622
        %2020 = vmatprep.mubr.f32.mxu0 %v1665
        %2021 = vmatmul.mubr.f32.gmra.mrb[0].mxu0 %v1661
        %v2022 = vpop.f32.mrb[0].mxu0
        %v2023 = vadd.f32 %v1953, %v2022
        %v2024 = vpop.f32.mrb[0].mxu0
        %2025 = vdwg.mxu0
        %v2026 = vld [vmem:[%s6] sm:$0xff]
        %v2027 = vld [vmem:[%s6 + $0x8] sm:$0xff]
        %v2028 = vld [vmem:[%s6 + $0x10] sm:$0xff]
        %v2029 = vld [vmem:[%s6 + $0x18] sm:$0xff]
        %v2030 = vld [vmem:[%s6 + $0x20] sm:$0xff]
        %v2031 = vld [vmem:[%s6 + $0x28] sm:$0xff]
        %v2032 = vld [vmem:[%s6 + $0x30] sm:$0xff]
        %v2033 = vld [vmem:[%s6 + $0x38] sm:$0xff]
        %v2034 = vld [vmem:[%s6 + $0x40] sm:$0xff]
        %v2035 = vld [vmem:[%s6 + $0x48] sm:$0xff]
        %v2036 = vld [vmem:[%s6 + $0x50] sm:$0xff]
        %v2037 = vld [vmem:[%s6 + $0x58] sm:$0xff]
        %v2038 = vld [vmem:[%s6 + $0x60] sm:$0xff]
        %v2039 = vld [vmem:[%s6 + $0x68] sm:$0xff]
        %v2040 = vld [vmem:[%s6 + $0x70] sm:$0xff]
        %v2041 = vld [vmem:[%s6 + $0x78] sm:$0xff]
        %v2042 = vld [vmem:[%s7] sm:$0x1]
        %2043 = vmatprep.subr.mxu0 0.0
        %2044 = vmatpush1.msra.mxu0 %v2026
        %2045 = vmatprep.subr.mxu0 0.0
        %2046 = vmatpush1.msra.mxu0 %v2027
        %2047 = vmatprep.subr.mxu0 0.0
        %2048 = vmatpush1.msra.mxu0 %v2028
        %2049 = vmatprep.subr.mxu0 0.0
        %2050 = vmatpush1.msra.mxu0 %v2029
        %2051 = vmatprep.subr.mxu0 0.0
        %2052 = vmatpush1.msra.mxu0 %v2030
        %2053 = vmatprep.subr.mxu0 0.0
        %2054 = vmatpush1.msra.mxu0 %v2031
        %2055 = vmatprep.subr.mxu0 0.0
        %2056 = vmatpush1.msra.mxu0 %v2032
        %2057 = vmatprep.subr.mxu0 0.0
        %2058 = vmatpush1.msra.mxu0 %v2033
        %2059 = vmatprep.subr.mxu0 0.0
        %2060 = vmatpush1.msra.mxu0 %v2034
        %2061 = vmatprep.subr.mxu0 0.0
        %2062 = vmatpush1.msra.mxu0 %v2035
        %2063 = vmatprep.subr.mxu0 0.0
        %2064 = vmatpush1.msra.mxu0 %v2036
        %2065 = vmatprep.subr.mxu0 0.0
        %2066 = vmatpush1.msra.mxu0 %v2037
        %2067 = vmatprep.subr.mxu0 0.0
        %2068 = vmatpush1.msra.mxu0 %v2038
        %2069 = vmatprep.subr.mxu0 0.0
        %2070 = vmatpush1.msra.mxu0 %v2039
        %2071 = vmatprep.subr.mxu0 0.0
        %2072 = vmatpush1.msra.mxu0 %v2040
        %2073 = vmatprep.subr.mxu0 0.0
        %2074 = vmatpush1.msra.mxu0 %v2041
        %2075 = vmatprep.subr.mxu0 0.0
        %2076 = vmatpush1.msra.mxu0 0.0
        %2077 = vmatprep.subr.mxu0 0.0
        %2078 = vmatpush1.msra.mxu0 0.0
        %2079 = vmatprep.subr.mxu0 0.0
        %2080 = vmatpush1.msra.mxu0 0.0
        %2081 = vmatprep.subr.mxu0 0.0
        %2082 = vmatpush1.msra.mxu0 0.0
        %2083 = vmatprep.subr.mxu0 0.0
        %2084 = vmatpush1.msra.mxu0 0.0
        %2085 = vmatprep.subr.mxu0 0.0
        %2086 = vmatpush1.msra.mxu0 0.0
        %2087 = vmatprep.subr.mxu0 0.0
        %2088 = vmatpush1.msra.mxu0 0.0
        %2089 = vmatprep.subr.mxu0 0.0
        %2090 = vmatpush1.msra.mxu0 0.0
        %2091 = vmatprep.subr.mxu0 0.0
        %2092 = vmatpush1.msra.mxu0 0.0
        %2093 = vmatprep.subr.mxu0 0.0
        %2094 = vmatpush1.msra.mxu0 0.0
        %2095 = vmatprep.subr.mxu0 0.0
        %2096 = vmatpush1.msra.mxu0 0.0
        %2097 = vmatprep.subr.mxu0 0.0
        %2098 = vmatpush1.msra.mxu0 0.0
        %2099 = vmatprep.subr.mxu0 0.0
        %2100 = vmatpush1.msra.mxu0 0.0
        %2101 = vmatprep.subr.mxu0 0.0
        %2102 = vmatpush1.msra.mxu0 0.0
        %2103 = vmatprep.subr.mxu0 0.0
        %2104 = vmatpush1.msra.mxu0 0.0
        %2105 = vmatprep.subr.mxu0 0.0
        %2106 = vmatpush1.msra.mxu0 0.0
        %2107 = vmatprep.mubr.f32.mxu0 0.0
        %2108 = vmatmul.mubr.f32.gmra.mrb[0].mxu0 %v2023
        %v2109 = vpop.f32.mrb[0].mxu0
        %v2110 = vadd.f32 %v2042, %v2109
        %v2111 = vpop.f32.mrb[0].mxu0
        %2112 = vdwg.mxu0
        %vm2113 = vcmask 24576
        %2114 = vst.msk [vmem:[%s310] sm:$0x1] %vm2113, %v2110
        %s2115 = sand.u32 %s204, 1
        %s2116 = scalar_lea.sflag [#allocation7], %s2115
        %s2117 = sand.u32 %s204, 1
        %s2118 = scalar_lea.vmem [#allocation8], %s2117
        // Predicated region
        $region57: #{fault_diagnosis_forward.1} parent=51 // pred_check
          %p2119 = pneg %p214
        $region58: #{fault_diagnosis_forward.1} parent=51 // pred_check_branch
          %2121 = sbr.rel (%p2119) target = $region60
        $region59: #{fault_diagnosis_forward.1} parent=51 // pred_region
          %s2123 = ssub.s32 16, 16
          %2124 = vsyncadd %s2116, %s2123
          %s2125 = smul.addr %s23, 16
          %s2126 = scalar_lea.hbm %s8, %s2125
          %s2128 = sshll.u32 %s2118, 4
          %s2129 = int_to_ptr.vmem [resolvable:$true] %s2128
          %2131 = dma.vmem_to_hbm [thread:$0]  %s2129, 16, %s2126, %s2116
        $region60: #{fault_diagnosis_forward.1} parent=51 // pred_fallthru
          _
      $region52: #{fault_diagnosis_forward.1} parent=5 // pred_fallthru
        _
      %p2132 = scmp.le.s32.totalorder 2, %s18
      // Predicated region
      $region61: #{fault_diagnosis_forward.1} parent=5 // pred_check
        %p2133 = pneg %p2132
      $region62: #{fault_diagnosis_forward.1} parent=5 // pred_check_branch
        %2135 = sbr.rel (%p2133) target = $region64
      $region63: #{fault_diagnosis_forward.1} parent=5 // pred_region
        %s2136 = ssub.s32 %s18, 2
        // Predicated region
        $region65: #{fault_diagnosis_forward.1} parent=63 // pred_check
          %p2137 = pneg %p220
        $region66: #{fault_diagnosis_forward.1} parent=63 // pred_check_branch
          %2139 = sbr.rel (%p2137) target = $region68
        $region67: #{fault_diagnosis_forward.1} parent=63 // pred_region
          %s2140 = sand.u32 %s205, 1
          %s2141 = scalar_lea.sflag [#allocation7], %s2140
          %s2142 = sand.u32 %s205, 1
          %s2143 = scalar_lea.vmem [#allocation8], %s2142
          %2144 = dma.done %s2141, 16
        $region68: #{fault_diagnosis_forward.1} parent=63 // pred_fallthru
          _
      $region64: #{fault_diagnosis_forward.1} parent=5 // pred_fallthru
        _
    $region6: #{fault_diagnosis_forward.1} parent=1 // loop_footer
      %s22 = sadd.s32 1, %s18
    $region7: #{fault_diagnosis_forward.1} parent=1 // loop_footer_branch
      %17 = sbr.rel target = $region3
    $region8: #{fault_diagnosis_forward.1} parent=1 // loop_exit
      _
    %2145 = vsyncpa [#allocation6], 1
    %s2146 = scalar_lea.sflag [#allocation6], 1
    %2147 = vsyncpa %s2146, 1
    %2148 = vsyncpa [#allocation7], 1
    %s2149 = scalar_lea.sflag [#allocation7], 1
    %2150 = vsyncpa %s2149, 1

</llo_original>
